<compile_context>
chip_gen: v7x
topology: tpu7x:2x2x1
jax: 0.10.0
libtpu: 0.0.40
codegen_flags: <defaults>
</compile_context>

<pallas_src>
import functools

import jax
import jax.numpy as jnp
from jax import lax
from jax.experimental import pallas as pl
from jax.experimental.pallas import tpu as pltpu


def _round_up(v, m):
    return ((v + m - 1) // m) * m


def _vmem_capacity_bytes():
    """Physical VMEM per core; conservative 64 MiB (v7x) fallback."""
    try:
        info = pltpu.get_tpu_info()
        cap = getattr(info, "vmem_capacity_bytes", None)
        if cap:
            return int(cap)
    except Exception:
        pass
    return 64 * 1024 * 1024


def _choose_b_tile(B, T, HP, scratch_itemsize, budget_bytes, max_tile):
    """Largest multiple-of-8 batch tile whose (xproj+acts) scratch fits the budget."""
    per_row = T * 4 * HP * scratch_itemsize          # 3*HP (xproj) + HP (acts) per row
    cap = max(8, (budget_bytes // max(per_row, 1)) // 8 * 8)
    return int(min(max_tile, _round_up(B, 8), cap))


def _vmem_estimate_bytes(T, Bt, F, HP, D1P, mxu_itemsize):
    scratch = T * Bt * 4 * HP * mxu_itemsize                       # xproj + acts
    x_tile = 2 * T * Bt * F * 4                                    # double-buffered x
    weights = 2 * ((F * 3 * HP + HP * 3 * HP + HP * D1P) * mxu_itemsize
                   + (3 * HP + HP + D1P + D1P + 1) * 4)            # double-buffered
    out_tile = 2 * Bt * 128 * 4
    return scratch + x_tile + weights + out_tile


# ----------------------------------------------------------------------------- #
# Kernel
# ----------------------------------------------------------------------------- #
def adopt_kernel(x_ref,            # (T, Bt, F)   time-major batch tile (f32)
                 wi_ref,           # (F, 3*HP)    [Wir|Wiz|Win]        (mxu dtype)
                 bi_ref,           # (1, 3*HP)    [bir+bhr|biz+bhz|bin] (f32)
                 wh_ref,           # (HP, 3*HP)   [Whr|Whz|Whn]        (mxu dtype)
                 bhn_ref,          # (1, HP)      bhn (stays inside r*(...)) (f32)
                 w1_ref,           # (HP, D1P)    dense1 weight        (mxu dtype)
                 b1_ref,           # (1, D1P)     (f32)
                 w2_ref,           # (1, D1P)     dense2 weight as a row (f32)
                 b2_ref,           # (1, 1)       (f32)
                 out_ref,          # (Bt, 128)    sigmoid(max_t logit), lane-broadcast
                 xproj_ref,        # scratch (T*Bt, 3*HP)  (mxu dtype)
                 acts_ref):        # scratch (T*Bt, HP)    (mxu dtype), raw h_t
    T, Bt, F = x_ref.shape
    HP = acts_ref.shape[-1]
    mxu_dt = wh_ref.dtype

    # ---- Stage 1: batched input projection (one MXU matmul, biases folded) ----
    # Leading-dim merge (T,Bt)->(T*Bt) is layout-free since Bt % 8 == 0 and F stays last.
    x2d = x_ref[...].reshape(T * Bt, F).astype(mxu_dt)
    xproj_ref[...] = (
        jnp.dot(x2d, wi_ref[...], preferred_element_type=jnp.float32)
        + bi_ref[...]
    ).astype(xproj_ref.dtype)

    wh = wh_ref[...]
    bhn = bhn_ref[...]

    # ---- Stage 2: GRU recurrence (only h-dependent work stays serial) ----
    # Gate math in f32; only the MXU operands are (optionally) bf16.
    def step(t, h):
        row = t * Bt
        if not isinstance(row, int):
            row = pl.multiple_of(row, Bt)
        xp = xproj_ref[pl.ds(row, Bt), :].astype(jnp.float32)            # (Bt, 3*HP)
        hp = jnp.dot(h.astype(mxu_dt), wh,
                     preferred_element_type=jnp.float32)                 # (Bt, 3*HP)
        r = jax.nn.sigmoid(xp[:, 0:HP] + hp[:, 0:HP])
        z = jax.nn.sigmoid(xp[:, HP:2 * HP] + hp[:, HP:2 * HP])
        n = jnp.tanh(xp[:, 2 * HP:3 * HP] + r * (hp[:, 2 * HP:3 * HP] + bhn))
        h_new = (1.0 - z) * n + z * h
        # Raw h_t stashed; tanh is deferred off the serial path (Stage 3).
        acts_ref[pl.ds(row, Bt), :] = h_new.astype(acts_ref.dtype)
        return h_new

    h0 = jnp.zeros((Bt, HP), jnp.float32)
    if T <= 32 and Bt <= 32:
        # Short recurrence, small tile: full unroll for LLO scheduler visibility.
        h = h0
        for t in range(T):
            h = step(t, h)
    else:
        # Large tile / long T: fori_loop bounds live ranges (avoids vreg spills).
        h = lax.fori_loop(0, T, step, h0, unroll=2)

    # ---- Stage 3: dense head, batched over all timesteps ----
    ga = jnp.tanh(acts_ref[...].astype(jnp.float32))                     # deferred tanh(h_t)
    o1 = jnp.tanh(jnp.dot(ga.astype(mxu_dt), w1_ref[...],
                          preferred_element_type=jnp.float32) + b1_ref[...])  # (T*Bt, D1P)
    # Linear(500 -> 1) as lane-dense VPU multiply + lane reduction (no N=1 MXU matmul).
    logits = jnp.sum(o1 * w2_ref[...], axis=-1, keepdims=True)           # (T*Bt, 1)
    logit_max = jnp.max(logits.reshape(T, Bt, 1), axis=0)                # (Bt, 1)
    # sigmoid monotonic -> apply once after the max (bit-equivalent to per-step).
    vals = jax.nn.sigmoid(logit_max + b2_ref[...])                       # (Bt, 1)
    # Lane-broadcast to 128 so the store is a full, unmasked vst.
    out_ref[...] = jnp.broadcast_to(vals, (Bt, out_ref.shape[-1]))


# ----------------------------------------------------------------------------- #
# Parameter packing: fuse gates, fold biases, pad lanes to multiples of 128.
# NOTE: zero padding of the hidden lanes is a correctness invariant (padded lanes of h
# provably stay 0); the bf16 cast preserves zeros exactly, biases stay f32.
# ----------------------------------------------------------------------------- #
def pack_params(params, mxu_dtype=jnp.bfloat16):
    (wir, wiz, win, whr, whz, whn,
     bir, biz, bin_, bhr, bhz, bhn,
     w1, b1, w2, b2) = params
    H = whr.shape[0]
    D1 = w1.shape[1]
    HP = _round_up(H, 128)
    D1P = _round_up(D1, 128)

    def pad_cols(a, cols):
        return jnp.pad(a, ((0, 0), (0, cols - a.shape[1])))

    def pad_mat(a, rows, cols):
        return jnp.pad(a, ((0, rows - a.shape[0]), (0, cols - a.shape[1])))

    wi_cat = jnp.concatenate(
        [pad_cols(wir, HP), pad_cols(wiz, HP), pad_cols(win, HP)],
        axis=1).astype(mxu_dtype)                                             # (F, 3HP)
    bi_cat = jnp.concatenate(
        [pad_cols(bir + bhr, HP), pad_cols(biz + bhz, HP), pad_cols(bin_, HP)],
        axis=1).astype(jnp.float32)                                           # (1, 3HP)
    wh_cat = jnp.concatenate(
        [pad_mat(whr, HP, HP), pad_mat(whz, HP, HP), pad_mat(whn, HP, HP)],
        axis=1).astype(mxu_dtype)                                             # (HP, 3HP)
    bhn_p = pad_cols(bhn, HP).astype(jnp.float32)                             # (1, HP)
    w1p = pad_mat(w1, HP, D1P).astype(mxu_dtype)                              # (HP, D1P)
    b1p = pad_cols(b1, D1P).astype(jnp.float32)                               # (1, D1P)
    w2row = pad_mat(w2.T, 1, D1P).astype(jnp.float32)                         # (1, D1P)
    b2m = b2.reshape(1, 1).astype(jnp.float32)                                # (1, 1)
    return (wi_cat, bi_cat, wh_cat, bhn_p, w1p, b1p, w2row, b2m)


# ----------------------------------------------------------------------------- #
# Wrapper
# ----------------------------------------------------------------------------- #
def adopt_forward(x, params, *, mxu_dtype=jnp.bfloat16, max_b_tile=128):
    """x: (B, T, F) float32 (PyTorch batch_first convention). Returns (B,)."""
    assert max_b_tile % 8 == 0
    B, T, F = x.shape
    packed = pack_params(params, mxu_dtype)
    wi_cat, bi_cat, wh_cat, bhn_p, w1p, b1p, w2row, b2m = packed
    HP = bhn_p.shape[-1]
    D1P = w1p.shape[-1]

    mxu_itemsize = jnp.dtype(mxu_dtype).itemsize
    vmem_cap = _vmem_capacity_bytes()                 # 128 MiB v5e/v6e, 64 MiB v7x
    # Scratch (xproj + acts) gets ~half of physical VMEM; the rest covers the
    # double-buffered x tile, the (double-buffered) weights and headroom.
    scratch_budget = max(16 << 20, vmem_cap // 2)
    b_tile = _choose_b_tile(B, T, HP, mxu_itemsize, scratch_budget, max_b_tile)
    assert b_tile % 8 == 0

    Bp = _round_up(B, b_tile)
    x_tm = jnp.transpose(x, (1, 0, 2))                # (T, B, F) time-major
    if Bp != B:
        x_tm = jnp.pad(x_tm, ((0, 0), (0, Bp - B), (0, 0)))

    est = _vmem_estimate_bytes(T, b_tile, F, HP, D1P, mxu_itemsize)
    vmem_limit = int(min(vmem_cap - (8 << 20), max(32 << 20, est + (8 << 20))))

    def full_spec(a):
        return pl.BlockSpec(a.shape, lambda b: (0,) * a.ndim)

    grid = (Bp // b_tile,)
    out = pl.pallas_call(
        adopt_kernel,
        out_shape=jax.ShapeDtypeStruct((Bp, 128), jnp.float32),
        grid_spec=pltpu.PrefetchScalarGridSpec(
            num_scalar_prefetch=0,
            grid=grid,
            in_specs=[
                pl.BlockSpec((T, b_tile, F), lambda b: (0, b, 0)),   # x batch tile
                full_spec(wi_cat), full_spec(bi_cat), full_spec(wh_cat),
                full_spec(bhn_p), full_spec(w1p), full_spec(b1p),
                full_spec(w2row), full_spec(b2m),
            ],
            out_specs=pl.BlockSpec((b_tile, 128), lambda b: (b, 0)),
            scratch_shapes=[
                pltpu.VMEM((T * b_tile, 3 * HP), mxu_dtype),   # precomputed input proj
                pltpu.VMEM((T * b_tile, HP), mxu_dtype),       # raw h_t for the head
            ],
        ),
        compiler_params=pltpu.CompilerParams(
            dimension_semantics=("parallel",),       # batch tiles across TensorCores
            vmem_limit_bytes=vmem_limit,
        ),
    )(x_tm, *packed)
    return out[:B, 0]                                # final_out.view(-1)


# ----------------------------------------------------------------------------- #
# Init + pure-JAX reference (for validation)
# ----------------------------------------------------------------------------- #
def init_params(key, n_features, hidden_size, d1=500):
    """Deterministic init mimicking PyTorch defaults (uniform +-1/sqrt(fan))."""
    ks = jax.random.split(key, 20)

    def U(k, shape, bound):
        return jax.random.uniform(k, shape, jnp.float32, -bound, bound)

    kg = 1.0 / (hidden_size ** 0.5)
    wir = U(ks[0], (n_features, hidden_size), kg)
    wiz = U(ks[1], (n_features, hidden_size), kg)
    win = U(ks[2], (n_features, hidden_size), kg)
    whr = U(ks[3], (hidden_size, hidden_size), kg)
    whz = U(ks[4], (hidden_size, hidden_size), kg)
    whn = U(ks[5], (hidden_size, hidden_size), kg)
    bir = U(ks[6], (1, hidden_size), kg)
    biz = U(ks[7], (1, hidden_size), kg)
    bin_ = U(ks[8], (1, hidden_size), kg)
    bhr = U(ks[9], (1, hidden_size), kg)
    bhz = U(ks[10], (1, hidden_size), kg)
    bhn = U(ks[11], (1, hidden_size), kg)
    k1 = 1.0 / (hidden_size ** 0.5)
    w1 = U(ks[12], (hidden_size, d1), k1)
    b1 = U(ks[13], (1, d1), k1)
    k2 = 1.0 / (d1 ** 0.5)
    w2 = U(ks[14], (d1, 1), k2)
    b2 = U(ks[15], (1, 1), k2)
    return (wir, wiz, win, whr, whz, whn,
            bir, biz, bin_, bhr, bhz, bhn,
            w1, b1, w2, b2)


def adopt_reference(x, params):
    (wir, wiz, win, whr, whz, whn,
     bir, biz, bin_, bhr, bhz, bhn,
     w1, b1, w2, b2) = params
    B, T, F = x.shape
    H = whr.shape[0]

    def cell(h, x_t):
        r = jax.nn.sigmoid(x_t @ wir + bir + h @ whr + bhr)
        z = jax.nn.sigmoid(x_t @ wiz + biz + h @ whz + bhz)
        n = jnp.tanh(x_t @ win + bin_ + r * (h @ whn + bhn))
        h_new = (1.0 - z) * n + z * h
        return h_new, h_new

    h0 = jnp.zeros((B, H), jnp.float32)
    _, hs = lax.scan(cell, h0, jnp.transpose(x, (1, 0, 2)))
    gru_out = jnp.transpose(hs, (1, 0, 2))
    o1 = jnp.tanh(jnp.tanh(gru_out) @ w1 + b1)
    proba_time = jax.nn.sigmoid(o1 @ w2 + b2)
    return jnp.max(proba_time, axis=1).reshape(-1)


if __name__ == "__main__":
    key = jax.random.PRNGKey(0)
    kx, kp, kx2, kp2 = jax.random.split(key, 4)

    fwd_f32 = jax.jit(functools.partial(adopt_forward, mxu_dtype=jnp.float32))
    fwd_bf16 = jax.jit(functools.partial(adopt_forward, mxu_dtype=jnp.bfloat16))

    # Case 1: module-default sizes (hidden_size=5), tiny batch -> unrolled recurrence.
    B, T, F, H = 2, 8, 4, 5
    x = jax.random.normal(kx, (B, T, F), jnp.float32)
    params = init_params(kp, F, H)
    ref = adopt_reference(x, params)

    out_f32 = jax.block_until_ready(fwd_f32(x, params))
    assert out_f32.shape == (B,)
    assert jnp.allclose(out_f32, ref, rtol=1e-3, atol=1e-3), (out_f32, ref)

    out_bf16 = jax.block_until_ready(fwd_bf16(x, params))   # bf16 MXU inputs: looser tol
    assert jnp.allclose(out_bf16, ref, rtol=2.5e-2, atol=2.5e-2), (out_bf16, ref)

    # Case 2: larger batch / longer sequence -> large batch tile + fori_loop path.
    B2, T2, F2, H2 = 64, 48, 6, 8
    x2 = jax.random.normal(kx2, (B2, T2, F2), jnp.float32)
    params2 = init_params(kp2, F2, H2)
    ref2 = adopt_reference(x2, params2)

    out2_f32 = jax.block_until_ready(fwd_f32(x2, params2))
    assert out2_f32.shape == (B2,)
    assert jnp.allclose(out2_f32, ref2, rtol=1e-3, atol=1e-3), (out2_f32, ref2)

    out2_bf16 = jax.block_until_ready(fwd_bf16(x2, params2))
    assert jnp.allclose(out2_bf16, ref2, rtol=2.5e-2, atol=2.5e-2), (out2_bf16, ref2)

    print("KERNEL_OK")
</pallas_src>

<mosaic_0001>
module attributes {stable_mosaic.version = 11 : i64} {
  func.func @adopt_kernel(%arg0: i32, %arg1: memref<8x8x4xf32, #tpu.memory_space<vmem>>, %arg2: memref<4x384xf32, #tpu.memory_space<vmem>>, %arg3: memref<1x384xf32, #tpu.memory_space<vmem>>, %arg4: memref<128x384xf32, #tpu.memory_space<vmem>>, %arg5: memref<1x128xf32, #tpu.memory_space<vmem>>, %arg6: memref<128x512xf32, #tpu.memory_space<vmem>>, %arg7: memref<1x512xf32, #tpu.memory_space<vmem>>, %arg8: memref<1x512xf32, #tpu.memory_space<vmem>>, %arg9: memref<1x1xf32, #tpu.memory_space<vmem>>, %arg10: memref<8x128xf32, #tpu.memory_space<vmem>>, %arg11: memref<64x384xf32, #tpu.memory_space<vmem>>, %arg12: memref<64x128xf32, #tpu.memory_space<vmem>>) attributes {dimension_semantics = [#tpu.dimension_semantics<parallel>], iteration_bounds = array<i64: 1>, scalar_prefetch = 0 : i64, scratch_operands = 2 : i64, tpu.core_type = #tpu.core_type<tc>, window_params = [{transform_indices = @transform_0, window_bounds = array<i64: 8, 8, 4>}, {pipeline_mode = #tpu.pipeline_mode<synchronous>, transform_indices = @transform_1, window_bounds = array<i64: 4, 384>}, {pipeline_mode = #tpu.pipeline_mode<synchronous>, transform_indices = @transform_2, window_bounds = array<i64: 1, 384>}, {pipeline_mode = #tpu.pipeline_mode<synchronous>, transform_indices = @transform_3, window_bounds = array<i64: 128, 384>}, {pipeline_mode = #tpu.pipeline_mode<synchronous>, transform_indices = @transform_4, window_bounds = array<i64: 1, 128>}, {pipeline_mode = #tpu.pipeline_mode<synchronous>, transform_indices = @transform_5, window_bounds = array<i64: 128, 512>}, {pipeline_mode = #tpu.pipeline_mode<synchronous>, transform_indices = @transform_6, window_bounds = array<i64: 1, 512>}, {pipeline_mode = #tpu.pipeline_mode<synchronous>, transform_indices = @transform_7, window_bounds = array<i64: 1, 512>}, {pipeline_mode = #tpu.pipeline_mode<synchronous>, transform_indices = @transform_8, window_bounds = array<i64: 1, 1>}, {transform_indices = @transform_9, window_bounds = array<i64: 8, 128>}]} {
    %c0 = arith.constant 0 : index
    %c0_0 = arith.constant 0 : index
    %c0_1 = arith.constant 0 : index
    %0 = vector.load %arg1[%c0, %c0_0, %c0_1] : memref<8x8x4xf32, #tpu.memory_space<vmem>>, vector<8x8x4xf32>
    %1 = vector.shape_cast %0 : vector<8x8x4xf32> to vector<64x4xf32>
    %c0_2 = arith.constant 0 : index
    %c0_3 = arith.constant 0 : index
    %2 = vector.load %arg2[%c0_2, %c0_3] : memref<4x384xf32, #tpu.memory_space<vmem>>, vector<4x384xf32>
    %cst = arith.constant dense<0.000000e+00> : vector<64x384xf32>
    %3 = tpu.matmul %1, %2, %cst {dimension_numbers = #tpu.dot_dimension_numbers<[1], [0], [0], [1], [0, 0, 1, 1], [], []>} : vector<64x4xf32>, vector<4x384xf32>, vector<64x384xf32> -> vector<64x384xf32>
    %c0_4 = arith.constant 0 : index
    %c0_5 = arith.constant 0 : index
    %4 = vector.load %arg3[%c0_4, %c0_5] : memref<1x384xf32, #tpu.memory_space<vmem>>, vector<1x384xf32>
    %5 = vector.broadcast %4 : vector<1x384xf32> to vector<64x384xf32>
    %6 = arith.addf %3, %5 : vector<64x384xf32>
    %c0_6 = arith.constant 0 : index
    %c0_7 = arith.constant 0 : index
    %7 = vector.load %arg11[%c0_6, %c0_7] : memref<64x384xf32, #tpu.memory_space<vmem>>, vector<64x384xf32>
    tpu.vector_store %arg11[%c0_6, %c0_7], %6 {strides = array<i32>} : memref<64x384xf32, #tpu.memory_space<vmem>>, vector<64x384xf32>,
    %c0_8 = arith.constant 0 : index
    %c0_9 = arith.constant 0 : index
    %8 = vector.load %arg4[%c0_8, %c0_9] : memref<128x384xf32, #tpu.memory_space<vmem>>, vector<128x384xf32>
    %c0_10 = arith.constant 0 : index
    %c0_11 = arith.constant 0 : index
    %9 = vector.load %arg5[%c0_10, %c0_11] : memref<1x128xf32, #tpu.memory_space<vmem>>, vector<1x128xf32>
    %cst_12 = arith.constant 0.000000e+00 : f32
    %10 = vector.broadcast %cst_12 : f32 to vector<8x128xf32>
    %c0_13 = arith.constant 0 : index
    %c0_14 = arith.constant 0 : index
    %11 = vector.load %arg11[%c0_13, %c0_14] : memref<64x384xf32, #tpu.memory_space<vmem>>, vector<8x384xf32>
    %cst_15 = arith.constant dense<0.000000e+00> : vector<8x384xf32>
    %12 = tpu.matmul %10, %8, %cst_15 {dimension_numbers = #tpu.dot_dimension_numbers<[1], [0], [0], [1], [0, 0, 1, 1], [], []>} : vector<8x128xf32>, vector<128x384xf32>, vector<8x384xf32> -> vector<8x384xf32>
    %13 = vector.extract_strided_slice %11 {offsets = [0, 0], sizes = [8, 128], strides = [1, 1]} : vector<8x384xf32> to vector<8x128xf32>
    %14 = vector.extract_strided_slice %12 {offsets = [0, 0], sizes = [8, 128], strides = [1, 1]} : vector<8x384xf32> to vector<8x128xf32>
    %15 = arith.addf %13, %14 : vector<8x128xf32>
    %16 = arith.negf %15 : vector<8x128xf32>
    %17 = math.exp %16 : vector<8x128xf32>
    %cst_16 = arith.constant 1.000000e+00 : f32
    %18 = vector.broadcast %cst_16 : f32 to vector<8x128xf32>
    %19 = arith.addf %18, %17 : vector<8x128xf32>
    %20 = arith.divf %18, %19 : vector<8x128xf32>
    %21 = vector.extract_strided_slice %11 {offsets = [0, 128], sizes = [8, 128], strides = [1, 1]} : vector<8x384xf32> to vector<8x128xf32>
    %22 = vector.extract_strided_slice %12 {offsets = [0, 128], sizes = [8, 128], strides = [1, 1]} : vector<8x384xf32> to vector<8x128xf32>
    %23 = arith.addf %21, %22 : vector<8x128xf32>
    %24 = arith.negf %23 : vector<8x128xf32>
    %25 = math.exp %24 : vector<8x128xf32>
    %cst_17 = arith.constant 1.000000e+00 : f32
    %26 = vector.broadcast %cst_17 : f32 to vector<8x128xf32>
    %27 = arith.addf %26, %25 : vector<8x128xf32>
    %28 = arith.divf %26, %27 : vector<8x128xf32>
    %29 = vector.extract_strided_slice %11 {offsets = [0, 256], sizes = [8, 128], strides = [1, 1]} : vector<8x384xf32> to vector<8x128xf32>
    %30 = vector.extract_strided_slice %12 {offsets = [0, 256], sizes = [8, 128], strides = [1, 1]} : vector<8x384xf32> to vector<8x128xf32>
    %31 = vector.broadcast %9 : vector<1x128xf32> to vector<8x128xf32>
    %32 = arith.addf %30, %31 : vector<8x128xf32>
    %33 = arith.mulf %20, %32 : vector<8x128xf32>
    %34 = arith.addf %29, %33 : vector<8x128xf32>
    %35 = math.tanh %34 : vector<8x128xf32>
    %cst_18 = arith.constant 1.000000e+00 : f32
    %36 = vector.broadcast %cst_18 : f32 to vector<8x128xf32>
    %37 = arith.subf %36, %28 : vector<8x128xf32>
    %38 = arith.mulf %37, %35 : vector<8x128xf32>
    %39 = arith.mulf %28, %10 : vector<8x128xf32>
    %40 = arith.addf %38, %39 : vector<8x128xf32>
    %c0_19 = arith.constant 0 : index
    %c0_20 = arith.constant 0 : index
    %41 = vector.load %arg12[%c0_19, %c0_20] : memref<64x128xf32, #tpu.memory_space<vmem>>, vector<8x128xf32>
    tpu.vector_store %arg12[%c0_19, %c0_20], %40 {strides = array<i32>} : memref<64x128xf32, #tpu.memory_space<vmem>>, vector<8x128xf32>,
    %c8 = arith.constant 8 : index
    %c0_21 = arith.constant 0 : index
    %42 = vector.load %arg11[%c8, %c0_21] : memref<64x384xf32, #tpu.memory_space<vmem>>, vector<8x384xf32>
    %cst_22 = arith.constant dense<0.000000e+00> : vector<8x384xf32>
    %43 = tpu.matmul %40, %8, %cst_22 {dimension_numbers = #tpu.dot_dimension_numbers<[1], [0], [0], [1], [0, 0, 1, 1], [], []>} : vector<8x128xf32>, vector<128x384xf32>, vector<8x384xf32> -> vector<8x384xf32>
    %44 = vector.extract_strided_slice %42 {offsets = [0, 0], sizes = [8, 128], strides = [1, 1]} : vector<8x384xf32> to vector<8x128xf32>
    %45 = vector.extract_strided_slice %43 {offsets = [0, 0], sizes = [8, 128], strides = [1, 1]} : vector<8x384xf32> to vector<8x128xf32>
    %46 = arith.addf %44, %45 : vector<8x128xf32>
    %47 = arith.negf %46 : vector<8x128xf32>
    %48 = math.exp %47 : vector<8x128xf32>
    %cst_23 = arith.constant 1.000000e+00 : f32
    %49 = vector.broadcast %cst_23 : f32 to vector<8x128xf32>
    %50 = arith.addf %49, %48 : vector<8x128xf32>
    %51 = arith.divf %49, %50 : vector<8x128xf32>
    %52 = vector.extract_strided_slice %42 {offsets = [0, 128], sizes = [8, 128], strides = [1, 1]} : vector<8x384xf32> to vector<8x128xf32>
    %53 = vector.extract_strided_slice %43 {offsets = [0, 128], sizes = [8, 128], strides = [1, 1]} : vector<8x384xf32> to vector<8x128xf32>
    %54 = arith.addf %52, %53 : vector<8x128xf32>
    %55 = arith.negf %54 : vector<8x128xf32>
    %56 = math.exp %55 : vector<8x128xf32>
    %cst_24 = arith.constant 1.000000e+00 : f32
    %57 = vector.broadcast %cst_24 : f32 to vector<8x128xf32>
    %58 = arith.addf %57, %56 : vector<8x128xf32>
    %59 = arith.divf %57, %58 : vector<8x128xf32>
    %60 = vector.extract_strided_slice %42 {offsets = [0, 256], sizes = [8, 128], strides = [1, 1]} : vector<8x384xf32> to vector<8x128xf32>
    %61 = vector.extract_strided_slice %43 {offsets = [0, 256], sizes = [8, 128], strides = [1, 1]} : vector<8x384xf32> to vector<8x128xf32>
    %62 = vector.broadcast %9 : vector<1x128xf32> to vector<8x128xf32>
    %63 = arith.addf %61, %62 : vector<8x128xf32>
    %64 = arith.mulf %51, %63 : vector<8x128xf32>
    %65 = arith.addf %60, %64 : vector<8x128xf32>
    %66 = math.tanh %65 : vector<8x128xf32>
    %cst_25 = arith.constant 1.000000e+00 : f32
    %67 = vector.broadcast %cst_25 : f32 to vector<8x128xf32>
    %68 = arith.subf %67, %59 : vector<8x128xf32>
    %69 = arith.mulf %68, %66 : vector<8x128xf32>
    %70 = arith.mulf %59, %40 : vector<8x128xf32>
    %71 = arith.addf %69, %70 : vector<8x128xf32>
    %c8_26 = arith.constant 8 : index
    %c0_27 = arith.constant 0 : index
    %72 = vector.load %arg12[%c8_26, %c0_27] : memref<64x128xf32, #tpu.memory_space<vmem>>, vector<8x128xf32>
    tpu.vector_store %arg12[%c8_26, %c0_27], %71 {strides = array<i32>} : memref<64x128xf32, #tpu.memory_space<vmem>>, vector<8x128xf32>,
    %c16 = arith.constant 16 : index
    %c0_28 = arith.constant 0 : index
    %73 = vector.load %arg11[%c16, %c0_28] : memref<64x384xf32, #tpu.memory_space<vmem>>, vector<8x384xf32>
    %cst_29 = arith.constant dense<0.000000e+00> : vector<8x384xf32>
    %74 = tpu.matmul %71, %8, %cst_29 {dimension_numbers = #tpu.dot_dimension_numbers<[1], [0], [0], [1], [0, 0, 1, 1], [], []>} : vector<8x128xf32>, vector<128x384xf32>, vector<8x384xf32> -> vector<8x384xf32>
    %75 = vector.extract_strided_slice %73 {offsets = [0, 0], sizes = [8, 128], strides = [1, 1]} : vector<8x384xf32> to vector<8x128xf32>
    %76 = vector.extract_strided_slice %74 {offsets = [0, 0], sizes = [8, 128], strides = [1, 1]} : vector<8x384xf32> to vector<8x128xf32>
    %77 = arith.addf %75, %76 : vector<8x128xf32>
    %78 = arith.negf %77 : vector<8x128xf32>
    %79 = math.exp %78 : vector<8x128xf32>
    %cst_30 = arith.constant 1.000000e+00 : f32
    %80 = vector.broadcast %cst_30 : f32 to vector<8x128xf32>
    %81 = arith.addf %80, %79 : vector<8x128xf32>
    %82 = arith.divf %80, %81 : vector<8x128xf32>
    %83 = vector.extract_strided_slice %73 {offsets = [0, 128], sizes = [8, 128], strides = [1, 1]} : vector<8x384xf32> to vector<8x128xf32>
    %84 = vector.extract_strided_slice %74 {offsets = [0, 128], sizes = [8, 128], strides = [1, 1]} : vector<8x384xf32> to vector<8x128xf32>
    %85 = arith.addf %83, %84 : vector<8x128xf32>
    %86 = arith.negf %85 : vector<8x128xf32>
    %87 = math.exp %86 : vector<8x128xf32>
    %cst_31 = arith.constant 1.000000e+00 : f32
    %88 = vector.broadcast %cst_31 : f32 to vector<8x128xf32>
    %89 = arith.addf %88, %87 : vector<8x128xf32>
    %90 = arith.divf %88, %89 : vector<8x128xf32>
    %91 = vector.extract_strided_slice %73 {offsets = [0, 256], sizes = [8, 128], strides = [1, 1]} : vector<8x384xf32> to vector<8x128xf32>
    %92 = vector.extract_strided_slice %74 {offsets = [0, 256], sizes = [8, 128], strides = [1, 1]} : vector<8x384xf32> to vector<8x128xf32>
    %93 = vector.broadcast %9 : vector<1x128xf32> to vector<8x128xf32>
    %94 = arith.addf %92, %93 : vector<8x128xf32>
    %95 = arith.mulf %82, %94 : vector<8x128xf32>
    %96 = arith.addf %91, %95 : vector<8x128xf32>
    %97 = math.tanh %96 : vector<8x128xf32>
    %cst_32 = arith.constant 1.000000e+00 : f32
    %98 = vector.broadcast %cst_32 : f32 to vector<8x128xf32>
    %99 = arith.subf %98, %90 : vector<8x128xf32>
    %100 = arith.mulf %99, %97 : vector<8x128xf32>
    %101 = arith.mulf %90, %71 : vector<8x128xf32>
    %102 = arith.addf %100, %101 : vector<8x128xf32>
    %c16_33 = arith.constant 16 : index
    %c0_34 = arith.constant 0 : index
    %103 = vector.load %arg12[%c16_33, %c0_34] : memref<64x128xf32, #tpu.memory_space<vmem>>, vector<8x128xf32>
    tpu.vector_store %arg12[%c16_33, %c0_34], %102 {strides = array<i32>} : memref<64x128xf32, #tpu.memory_space<vmem>>, vector<8x128xf32>,
    %c24 = arith.constant 24 : index
    %c0_35 = arith.constant 0 : index
    %104 = vector.load %arg11[%c24, %c0_35] : memref<64x384xf32, #tpu.memory_space<vmem>>, vector<8x384xf32>
    %cst_36 = arith.constant dense<0.000000e+00> : vector<8x384xf32>
    %105 = tpu.matmul %102, %8, %cst_36 {dimension_numbers = #tpu.dot_dimension_numbers<[1], [0], [0], [1], [0, 0, 1, 1], [], []>} : vector<8x128xf32>, vector<128x384xf32>, vector<8x384xf32> -> vector<8x384xf32>
    %106 = vector.extract_strided_slice %104 {offsets = [0, 0], sizes = [8, 128], strides = [1, 1]} : vector<8x384xf32> to vector<8x128xf32>
    %107 = vector.extract_strided_slice %105 {offsets = [0, 0], sizes = [8, 128], strides = [1, 1]} : vector<8x384xf32> to vector<8x128xf32>
    %108 = arith.addf %106, %107 : vector<8x128xf32>
    %109 = arith.negf %108 : vector<8x128xf32>
    %110 = math.exp %109 : vector<8x128xf32>
    %cst_37 = arith.constant 1.000000e+00 : f32
    %111 = vector.broadcast %cst_37 : f32 to vector<8x128xf32>
    %112 = arith.addf %111, %110 : vector<8x128xf32>
    %113 = arith.divf %111, %112 : vector<8x128xf32>
    %114 = vector.extract_strided_slice %104 {offsets = [0, 128], sizes = [8, 128], strides = [1, 1]} : vector<8x384xf32> to vector<8x128xf32>
    %115 = vector.extract_strided_slice %105 {offsets = [0, 128], sizes = [8, 128], strides = [1, 1]} : vector<8x384xf32> to vector<8x128xf32>
    %116 = arith.addf %114, %115 : vector<8x128xf32>
    %117 = arith.negf %116 : vector<8x128xf32>
    %118 = math.exp %117 : vector<8x128xf32>
    %cst_38 = arith.constant 1.000000e+00 : f32
    %119 = vector.broadcast %cst_38 : f32 to vector<8x128xf32>
    %120 = arith.addf %119, %118 : vector<8x128xf32>
    %121 = arith.divf %119, %120 : vector<8x128xf32>
    %122 = vector.extract_strided_slice %104 {offsets = [0, 256], sizes = [8, 128], strides = [1, 1]} : vector<8x384xf32> to vector<8x128xf32>
    %123 = vector.extract_strided_slice %105 {offsets = [0, 256], sizes = [8, 128], strides = [1, 1]} : vector<8x384xf32> to vector<8x128xf32>
    %124 = vector.broadcast %9 : vector<1x128xf32> to vector<8x128xf32>
    %125 = arith.addf %123, %124 : vector<8x128xf32>
    %126 = arith.mulf %113, %125 : vector<8x128xf32>
    %127 = arith.addf %122, %126 : vector<8x128xf32>
    %128 = math.tanh %127 : vector<8x128xf32>
    %cst_39 = arith.constant 1.000000e+00 : f32
    %129 = vector.broadcast %cst_39 : f32 to vector<8x128xf32>
    %130 = arith.subf %129, %121 : vector<8x128xf32>
    %131 = arith.mulf %130, %128 : vector<8x128xf32>
    %132 = arith.mulf %121, %102 : vector<8x128xf32>
    %133 = arith.addf %131, %132 : vector<8x128xf32>
    %c24_40 = arith.constant 24 : index
    %c0_41 = arith.constant 0 : index
    %134 = vector.load %arg12[%c24_40, %c0_41] : memref<64x128xf32, #tpu.memory_space<vmem>>, vector<8x128xf32>
    tpu.vector_store %arg12[%c24_40, %c0_41], %133 {strides = array<i32>} : memref<64x128xf32, #tpu.memory_space<vmem>>, vector<8x128xf32>,
    %c32 = arith.constant 32 : index
    %c0_42 = arith.constant 0 : index
    %135 = vector.load %arg11[%c32, %c0_42] : memref<64x384xf32, #tpu.memory_space<vmem>>, vector<8x384xf32>
    %cst_43 = arith.constant dense<0.000000e+00> : vector<8x384xf32>
    %136 = tpu.matmul %133, %8, %cst_43 {dimension_numbers = #tpu.dot_dimension_numbers<[1], [0], [0], [1], [0, 0, 1, 1], [], []>} : vector<8x128xf32>, vector<128x384xf32>, vector<8x384xf32> -> vector<8x384xf32>
    %137 = vector.extract_strided_slice %135 {offsets = [0, 0], sizes = [8, 128], strides = [1, 1]} : vector<8x384xf32> to vector<8x128xf32>
    %138 = vector.extract_strided_slice %136 {offsets = [0, 0], sizes = [8, 128], strides = [1, 1]} : vector<8x384xf32> to vector<8x128xf32>
    %139 = arith.addf %137, %138 : vector<8x128xf32>
    %140 = arith.negf %139 : vector<8x128xf32>
    %141 = math.exp %140 : vector<8x128xf32>
    %cst_44 = arith.constant 1.000000e+00 : f32
    %142 = vector.broadcast %cst_44 : f32 to vector<8x128xf32>
    %143 = arith.addf %142, %141 : vector<8x128xf32>
    %144 = arith.divf %142, %143 : vector<8x128xf32>
    %145 = vector.extract_strided_slice %135 {offsets = [0, 128], sizes = [8, 128], strides = [1, 1]} : vector<8x384xf32> to vector<8x128xf32>
    %146 = vector.extract_strided_slice %136 {offsets = [0, 128], sizes = [8, 128], strides = [1, 1]} : vector<8x384xf32> to vector<8x128xf32>
    %147 = arith.addf %145, %146 : vector<8x128xf32>
    %148 = arith.negf %147 : vector<8x128xf32>
    %149 = math.exp %148 : vector<8x128xf32>
    %cst_45 = arith.constant 1.000000e+00 : f32
    %150 = vector.broadcast %cst_45 : f32 to vector<8x128xf32>
    %151 = arith.addf %150, %149 : vector<8x128xf32>
    %152 = arith.divf %150, %151 : vector<8x128xf32>
    %153 = vector.extract_strided_slice %135 {offsets = [0, 256], sizes = [8, 128], strides = [1, 1]} : vector<8x384xf32> to vector<8x128xf32>
    %154 = vector.extract_strided_slice %136 {offsets = [0, 256], sizes = [8, 128], strides = [1, 1]} : vector<8x384xf32> to vector<8x128xf32>
    %155 = vector.broadcast %9 : vector<1x128xf32> to vector<8x128xf32>
    %156 = arith.addf %154, %155 : vector<8x128xf32>
    %157 = arith.mulf %144, %156 : vector<8x128xf32>
    %158 = arith.addf %153, %157 : vector<8x128xf32>
    %159 = math.tanh %158 : vector<8x128xf32>
    %cst_46 = arith.constant 1.000000e+00 : f32
    %160 = vector.broadcast %cst_46 : f32 to vector<8x128xf32>
    %161 = arith.subf %160, %152 : vector<8x128xf32>
    %162 = arith.mulf %161, %159 : vector<8x128xf32>
    %163 = arith.mulf %152, %133 : vector<8x128xf32>
    %164 = arith.addf %162, %163 : vector<8x128xf32>
    %c32_47 = arith.constant 32 : index
    %c0_48 = arith.constant 0 : index
    %165 = vector.load %arg12[%c32_47, %c0_48] : memref<64x128xf32, #tpu.memory_space<vmem>>, vector<8x128xf32>
    tpu.vector_store %arg12[%c32_47, %c0_48], %164 {strides = array<i32>} : memref<64x128xf32, #tpu.memory_space<vmem>>, vector<8x128xf32>,
    %c40 = arith.constant 40 : index
    %c0_49 = arith.constant 0 : index
    %166 = vector.load %arg11[%c40, %c0_49] : memref<64x384xf32, #tpu.memory_space<vmem>>, vector<8x384xf32>
    %cst_50 = arith.constant dense<0.000000e+00> : vector<8x384xf32>
    %167 = tpu.matmul %164, %8, %cst_50 {dimension_numbers = #tpu.dot_dimension_numbers<[1], [0], [0], [1], [0, 0, 1, 1], [], []>} : vector<8x128xf32>, vector<128x384xf32>, vector<8x384xf32> -> vector<8x384xf32>
    %168 = vector.extract_strided_slice %166 {offsets = [0, 0], sizes = [8, 128], strides = [1, 1]} : vector<8x384xf32> to vector<8x128xf32>
    %169 = vector.extract_strided_slice %167 {offsets = [0, 0], sizes = [8, 128], strides = [1, 1]} : vector<8x384xf32> to vector<8x128xf32>
    %170 = arith.addf %168, %169 : vector<8x128xf32>
    %171 = arith.negf %170 : vector<8x128xf32>
    %172 = math.exp %171 : vector<8x128xf32>
    %cst_51 = arith.constant 1.000000e+00 : f32
    %173 = vector.broadcast %cst_51 : f32 to vector<8x128xf32>
    %174 = arith.addf %173, %172 : vector<8x128xf32>
    %175 = arith.divf %173, %174 : vector<8x128xf32>
    %176 = vector.extract_strided_slice %166 {offsets = [0, 128], sizes = [8, 128], strides = [1, 1]} : vector<8x384xf32> to vector<8x128xf32>
    %177 = vector.extract_strided_slice %167 {offsets = [0, 128], sizes = [8, 128], strides = [1, 1]} : vector<8x384xf32> to vector<8x128xf32>
    %178 = arith.addf %176, %177 : vector<8x128xf32>
    %179 = arith.negf %178 : vector<8x128xf32>
    %180 = math.exp %179 : vector<8x128xf32>
    %cst_52 = arith.constant 1.000000e+00 : f32
    %181 = vector.broadcast %cst_52 : f32 to vector<8x128xf32>
    %182 = arith.addf %181, %180 : vector<8x128xf32>
    %183 = arith.divf %181, %182 : vector<8x128xf32>
    %184 = vector.extract_strided_slice %166 {offsets = [0, 256], sizes = [8, 128], strides = [1, 1]} : vector<8x384xf32> to vector<8x128xf32>
    %185 = vector.extract_strided_slice %167 {offsets = [0, 256], sizes = [8, 128], strides = [1, 1]} : vector<8x384xf32> to vector<8x128xf32>
    %186 = vector.broadcast %9 : vector<1x128xf32> to vector<8x128xf32>
    %187 = arith.addf %185, %186 : vector<8x128xf32>
    %188 = arith.mulf %175, %187 : vector<8x128xf32>
    %189 = arith.addf %184, %188 : vector<8x128xf32>
    %190 = math.tanh %189 : vector<8x128xf32>
    %cst_53 = arith.constant 1.000000e+00 : f32
    %191 = vector.broadcast %cst_53 : f32 to vector<8x128xf32>
    %192 = arith.subf %191, %183 : vector<8x128xf32>
    %193 = arith.mulf %192, %190 : vector<8x128xf32>
    %194 = arith.mulf %183, %164 : vector<8x128xf32>
    %195 = arith.addf %193, %194 : vector<8x128xf32>
    %c40_54 = arith.constant 40 : index
    %c0_55 = arith.constant 0 : index
    %196 = vector.load %arg12[%c40_54, %c0_55] : memref<64x128xf32, #tpu.memory_space<vmem>>, vector<8x128xf32>
    tpu.vector_store %arg12[%c40_54, %c0_55], %195 {strides = array<i32>} : memref<64x128xf32, #tpu.memory_space<vmem>>, vector<8x128xf32>,
    %c48 = arith.constant 48 : index
    %c0_56 = arith.constant 0 : index
    %197 = vector.load %arg11[%c48, %c0_56] : memref<64x384xf32, #tpu.memory_space<vmem>>, vector<8x384xf32>
    %cst_57 = arith.constant dense<0.000000e+00> : vector<8x384xf32>
    %198 = tpu.matmul %195, %8, %cst_57 {dimension_numbers = #tpu.dot_dimension_numbers<[1], [0], [0], [1], [0, 0, 1, 1], [], []>} : vector<8x128xf32>, vector<128x384xf32>, vector<8x384xf32> -> vector<8x384xf32>
    %199 = vector.extract_strided_slice %197 {offsets = [0, 0], sizes = [8, 128], strides = [1, 1]} : vector<8x384xf32> to vector<8x128xf32>
    %200 = vector.extract_strided_slice %198 {offsets = [0, 0], sizes = [8, 128], strides = [1, 1]} : vector<8x384xf32> to vector<8x128xf32>
    %201 = arith.addf %199, %200 : vector<8x128xf32>
    %202 = arith.negf %201 : vector<8x128xf32>
    %203 = math.exp %202 : vector<8x128xf32>
    %cst_58 = arith.constant 1.000000e+00 : f32
    %204 = vector.broadcast %cst_58 : f32 to vector<8x128xf32>
    %205 = arith.addf %204, %203 : vector<8x128xf32>
    %206 = arith.divf %204, %205 : vector<8x128xf32>
    %207 = vector.extract_strided_slice %197 {offsets = [0, 128], sizes = [8, 128], strides = [1, 1]} : vector<8x384xf32> to vector<8x128xf32>
    %208 = vector.extract_strided_slice %198 {offsets = [0, 128], sizes = [8, 128], strides = [1, 1]} : vector<8x384xf32> to vector<8x128xf32>
    %209 = arith.addf %207, %208 : vector<8x128xf32>
    %210 = arith.negf %209 : vector<8x128xf32>
    %211 = math.exp %210 : vector<8x128xf32>
    %cst_59 = arith.constant 1.000000e+00 : f32
    %212 = vector.broadcast %cst_59 : f32 to vector<8x128xf32>
    %213 = arith.addf %212, %211 : vector<8x128xf32>
    %214 = arith.divf %212, %213 : vector<8x128xf32>
    %215 = vector.extract_strided_slice %197 {offsets = [0, 256], sizes = [8, 128], strides = [1, 1]} : vector<8x384xf32> to vector<8x128xf32>
    %216 = vector.extract_strided_slice %198 {offsets = [0, 256], sizes = [8, 128], strides = [1, 1]} : vector<8x384xf32> to vector<8x128xf32>
    %217 = vector.broadcast %9 : vector<1x128xf32> to vector<8x128xf32>
    %218 = arith.addf %216, %217 : vector<8x128xf32>
    %219 = arith.mulf %206, %218 : vector<8x128xf32>
    %220 = arith.addf %215, %219 : vector<8x128xf32>
    %221 = math.tanh %220 : vector<8x128xf32>
    %cst_60 = arith.constant 1.000000e+00 : f32
    %222 = vector.broadcast %cst_60 : f32 to vector<8x128xf32>
    %223 = arith.subf %222, %214 : vector<8x128xf32>
    %224 = arith.mulf %223, %221 : vector<8x128xf32>
    %225 = arith.mulf %214, %195 : vector<8x128xf32>
    %226 = arith.addf %224, %225 : vector<8x128xf32>
    %c48_61 = arith.constant 48 : index
    %c0_62 = arith.constant 0 : index
    %227 = vector.load %arg12[%c48_61, %c0_62] : memref<64x128xf32, #tpu.memory_space<vmem>>, vector<8x128xf32>
    tpu.vector_store %arg12[%c48_61, %c0_62], %226 {strides = array<i32>} : memref<64x128xf32, #tpu.memory_space<vmem>>, vector<8x128xf32>,
    %c56 = arith.constant 56 : index
    %c0_63 = arith.constant 0 : index
    %228 = vector.load %arg11[%c56, %c0_63] : memref<64x384xf32, #tpu.memory_space<vmem>>, vector<8x384xf32>
    %cst_64 = arith.constant dense<0.000000e+00> : vector<8x384xf32>
    %229 = tpu.matmul %226, %8, %cst_64 {dimension_numbers = #tpu.dot_dimension_numbers<[1], [0], [0], [1], [0, 0, 1, 1], [], []>} : vector<8x128xf32>, vector<128x384xf32>, vector<8x384xf32> -> vector<8x384xf32>
    %230 = vector.extract_strided_slice %228 {offsets = [0, 0], sizes = [8, 128], strides = [1, 1]} : vector<8x384xf32> to vector<8x128xf32>
    %231 = vector.extract_strided_slice %229 {offsets = [0, 0], sizes = [8, 128], strides = [1, 1]} : vector<8x384xf32> to vector<8x128xf32>
    %232 = arith.addf %230, %231 : vector<8x128xf32>
    %233 = arith.negf %232 : vector<8x128xf32>
    %234 = math.exp %233 : vector<8x128xf32>
    %cst_65 = arith.constant 1.000000e+00 : f32
    %235 = vector.broadcast %cst_65 : f32 to vector<8x128xf32>
    %236 = arith.addf %235, %234 : vector<8x128xf32>
    %237 = arith.divf %235, %236 : vector<8x128xf32>
    %238 = vector.extract_strided_slice %228 {offsets = [0, 128], sizes = [8, 128], strides = [1, 1]} : vector<8x384xf32> to vector<8x128xf32>
    %239 = vector.extract_strided_slice %229 {offsets = [0, 128], sizes = [8, 128], strides = [1, 1]} : vector<8x384xf32> to vector<8x128xf32>
    %240 = arith.addf %238, %239 : vector<8x128xf32>
    %241 = arith.negf %240 : vector<8x128xf32>
    %242 = math.exp %241 : vector<8x128xf32>
    %cst_66 = arith.constant 1.000000e+00 : f32
    %243 = vector.broadcast %cst_66 : f32 to vector<8x128xf32>
    %244 = arith.addf %243, %242 : vector<8x128xf32>
    %245 = arith.divf %243, %244 : vector<8x128xf32>
    %246 = vector.extract_strided_slice %228 {offsets = [0, 256], sizes = [8, 128], strides = [1, 1]} : vector<8x384xf32> to vector<8x128xf32>
    %247 = vector.extract_strided_slice %229 {offsets = [0, 256], sizes = [8, 128], strides = [1, 1]} : vector<8x384xf32> to vector<8x128xf32>
    %248 = vector.broadcast %9 : vector<1x128xf32> to vector<8x128xf32>
    %249 = arith.addf %247, %248 : vector<8x128xf32>
    %250 = arith.mulf %237, %249 : vector<8x128xf32>
    %251 = arith.addf %246, %250 : vector<8x128xf32>
    %252 = math.tanh %251 : vector<8x128xf32>
    %cst_67 = arith.constant 1.000000e+00 : f32
    %253 = vector.broadcast %cst_67 : f32 to vector<8x128xf32>
    %254 = arith.subf %253, %245 : vector<8x128xf32>
    %255 = arith.mulf %254, %252 : vector<8x128xf32>
    %256 = arith.mulf %245, %226 : vector<8x128xf32>
    %257 = arith.addf %255, %256 : vector<8x128xf32>
    %c56_68 = arith.constant 56 : index
    %c0_69 = arith.constant 0 : index
    %258 = vector.load %arg12[%c56_68, %c0_69] : memref<64x128xf32, #tpu.memory_space<vmem>>, vector<8x128xf32>
    tpu.vector_store %arg12[%c56_68, %c0_69], %257 {strides = array<i32>} : memref<64x128xf32, #tpu.memory_space<vmem>>, vector<8x128xf32>,
    %c0_70 = arith.constant 0 : index
    %c0_71 = arith.constant 0 : index
    %259 = vector.load %arg12[%c0_70, %c0_71] : memref<64x128xf32, #tpu.memory_space<vmem>>, vector<64x128xf32>
    %260 = math.tanh %259 : vector<64x128xf32>
    %c0_72 = arith.constant 0 : index
    %c0_73 = arith.constant 0 : index
    %261 = vector.load %arg6[%c0_72, %c0_73] : memref<128x512xf32, #tpu.memory_space<vmem>>, vector<128x512xf32>
    %cst_74 = arith.constant dense<0.000000e+00> : vector<64x512xf32>
    %262 = tpu.matmul %260, %261, %cst_74 {dimension_numbers = #tpu.dot_dimension_numbers<[1], [0], [0], [1], [0, 0, 1, 1], [], []>} : vector<64x128xf32>, vector<128x512xf32>, vector<64x512xf32> -> vector<64x512xf32>
    %c0_75 = arith.constant 0 : index
    %c0_76 = arith.constant 0 : index
    %263 = vector.load %arg7[%c0_75, %c0_76] : memref<1x512xf32, #tpu.memory_space<vmem>>, vector<1x512xf32>
    %264 = vector.broadcast %263 : vector<1x512xf32> to vector<64x512xf32>
    %265 = arith.addf %262, %264 : vector<64x512xf32>
    %266 = math.tanh %265 : vector<64x512xf32>
    %c0_77 = arith.constant 0 : index
    %c0_78 = arith.constant 0 : index
    %267 = vector.load %arg8[%c0_77, %c0_78] : memref<1x512xf32, #tpu.memory_space<vmem>>, vector<1x512xf32>
    %268 = vector.broadcast %267 : vector<1x512xf32> to vector<64x512xf32>
    %269 = arith.mulf %266, %268 : vector<64x512xf32>
    %cst_79 = arith.constant dense<0.000000e+00> : vector<64xf32>
    %270 = vector.multi_reduction <add>, %269, %cst_79 [1] : vector<64x512xf32> to vector<64xf32>
    %271 = vector.shape_cast %270 : vector<64xf32> to vector<64x1xf32>
    %272 = vector.shape_cast %271 : vector<64x1xf32> to vector<8x8x1xf32>
    %cst_80 = arith.constant dense<0xFF800000> : vector<8x1xf32>
    %273 = vector.multi_reduction <maximumf>, %272, %cst_80 [0] : vector<8x8x1xf32> to vector<8x1xf32>
    %c0_81 = arith.constant 0 : index
    %c0_82 = arith.constant 0 : index
    %274 = vector.load %arg9[%c0_81, %c0_82] : memref<1x1xf32, #tpu.memory_space<vmem>>, vector<1x1xf32>
    %275 = vector.broadcast %274 : vector<1x1xf32> to vector<8x1xf32>
    %276 = arith.addf %273, %275 : vector<8x1xf32>
    %277 = arith.negf %276 : vector<8x1xf32>
    %278 = math.exp %277 : vector<8x1xf32>
    %cst_83 = arith.constant 1.000000e+00 : f32
    %279 = vector.broadcast %cst_83 : f32 to vector<8x1xf32>
    %280 = arith.addf %279, %278 : vector<8x1xf32>
    %281 = arith.divf %279, %280 : vector<8x1xf32>
    %282 = vector.shape_cast %281 : vector<8x1xf32> to vector<8x1xf32>
    %283 = vector.broadcast %282 : vector<8x1xf32> to vector<8x128xf32>
    %c0_84 = arith.constant 0 : index
    %c0_85 = arith.constant 0 : index
    %284 = vector.load %arg10[%c0_84, %c0_85] : memref<8x128xf32, #tpu.memory_space<vmem>>, vector<8x128xf32>
    tpu.vector_store %arg10[%c0_84, %c0_85], %283 {strides = array<i32>} : memref<8x128xf32, #tpu.memory_space<vmem>>, vector<8x128xf32>,
    return
  }
  func.func @transform_0(%arg0: i32) -> (i32, i32, i32) {
    %c0_i32 = arith.constant 0 : i32
    %c0_i32_0 = arith.constant 0 : i32
    %c0_i32_1 = arith.constant 0 : i32
    return %c0_i32, %arg0, %c0_i32_0 : i32, i32, i32
  }
  func.func @transform_1(%arg0: i32) -> (i32, i32) {
    %c0_i32 = arith.constant 0 : i32
    %c0_i32_0 = arith.constant 0 : i32
    %c0_i32_1 = arith.constant 0 : i32
    return %c0_i32, %c0_i32_0 : i32, i32
  }
  func.func @transform_2(%arg0: i32) -> (i32, i32) {
    %c0_i32 = arith.constant 0 : i32
    %c0_i32_0 = arith.constant 0 : i32
    %c0_i32_1 = arith.constant 0 : i32
    return %c0_i32, %c0_i32_0 : i32, i32
  }
  func.func @transform_3(%arg0: i32) -> (i32, i32) {
    %c0_i32 = arith.constant 0 : i32
    %c0_i32_0 = arith.constant 0 : i32
    %c0_i32_1 = arith.constant 0 : i32
    return %c0_i32, %c0_i32_0 : i32, i32
  }
  func.func @transform_4(%arg0: i32) -> (i32, i32) {
    %c0_i32 = arith.constant 0 : i32
    %c0_i32_0 = arith.constant 0 : i32
    %c0_i32_1 = arith.constant 0 : i32
    return %c0_i32, %c0_i32_0 : i32, i32
  }
  func.func @transform_5(%arg0: i32) -> (i32, i32) {
    %c0_i32 = arith.constant 0 : i32
    %c0_i32_0 = arith.constant 0 : i32
    %c0_i32_1 = arith.constant 0 : i32
    return %c0_i32, %c0_i32_0 : i32, i32
  }
  func.func @transform_6(%arg0: i32) -> (i32, i32) {
    %c0_i32 = arith.constant 0 : i32
    %c0_i32_0 = arith.constant 0 : i32
    %c0_i32_1 = arith.constant 0 : i32
    return %c0_i32, %c0_i32_0 : i32, i32
  }
  func.func @transform_7(%arg0: i32) -> (i32, i32) {
    %c0_i32 = arith.constant 0 : i32
    %c0_i32_0 = arith.constant 0 : i32
    %c0_i32_1 = arith.constant 0 : i32
    return %c0_i32, %c0_i32_0 : i32, i32
  }
  func.func @transform_8(%arg0: i32) -> (i32, i32) {
    %c0_i32 = arith.constant 0 : i32
    %c0_i32_0 = arith.constant 0 : i32
    %c0_i32_1 = arith.constant 0 : i32
    return %c0_i32, %c0_i32_0 : i32, i32
  }
  func.func @transform_9(%arg0: i32) -> (i32, i32) {
    %c0_i32 = arith.constant 0 : i32
    %c0_i32_0 = arith.constant 0 : i32
    return %arg0, %c0_i32 : i32, i32
  }
}

</mosaic_0001>

<llo_original>
// kernel: adopt_forward.1
$region0: #{adopt_forward.1}
  #allocation0 [shape = 'u32[]', space=smem, size = 0x4, offset = 0x4, fixed_abs, tag = 'smem constant byte address 0x4 - core index']
  #allocation1 [shape = 'u32[144,128]{1,0:T(1,128)}', space=vmem, size = 0x12000, scoped, tag = 'internal scratch']
  #allocation2 [shape = 'f32[64,384]{1,0:T(8,128)}', space=vmem, size = 0x18000, scoped, tag = 'scratch operand']
  #allocation3 [shape = 'f32[64,128]{1,0:T(8,128)}', space=vmem, size = 0x8000, scoped, tag = 'scratch operand']
  #allocation4 [shape = 'f32[1,1]{1,0:T(1,128)S(1)}', space=vmem, size = 0x200, scoped, tag = 'scoped memory for adopt_forward.1']
  %s0 = inlined_call_operand.vmem [shape: f32[8,8,4], index: 0, kind: input, shape index: {}]
  %s1 = inlined_call_operand.vmem [shape: f32[4,384], index: 1, kind: input, shape index: {}]
  %s2 = inlined_call_operand.vmem [shape: f32[1,384], index: 2, kind: input, shape index: {}]
  %s3 = inlined_call_operand.vmem [shape: f32[128,384], index: 3, kind: input, shape index: {}]
  %s4 = inlined_call_operand.vmem [shape: f32[1,128], index: 4, kind: input, shape index: {}]
  %s5 = inlined_call_operand.vmem [shape: f32[128,512], index: 5, kind: input, shape index: {}]
  %s6 = inlined_call_operand.vmem [shape: f32[1,512], index: 6, kind: input, shape index: {}]
  %s7 = inlined_call_operand.vmem [shape: f32[1,512], index: 7, kind: input, shape index: {}]
  %s8 = inlined_call_operand.<no memory space> [shape: f32[1,1], index: 8, kind: input, shape index: {}]
  %s9 = inlined_call_operand.vmem [shape: f32[8,128], index: 9, kind: output, shape index: {}]
  %s10 = sld [smem:[#allocation0]]
  $region46: #{adopt_forward.1} parent=0
    _
  %s12 = ssub.s32 1, %s10
  %s13 = scalar_select 0, %s12, %s10
  %v14 = vstv %s8
  %15 = vst [vmem:[#allocation4] sm:$0x1] %v14
  // Predicated region
  $region2: #{adopt_forward.1} parent=0 // pred_check
    _
  $region3: #{adopt_forward.1} parent=0 // pred_check_branch
    %17 = sbr.rel (0) target = $region5
  $region4: #{adopt_forward.1} parent=0 // pred_region
    _
  $region5: #{adopt_forward.1} parent=0 // pred_fallthru
    _
  // Predicated region
  $region6: #{adopt_forward.1} parent=0 // pred_check
    _
  $region7: #{adopt_forward.1} parent=0 // pred_check_branch
    %19 = sbr.rel (0) target = $region9
  $region8: #{adopt_forward.1} parent=0 // pred_region
    _
  $region9: #{adopt_forward.1} parent=0 // pred_fallthru
    _
  // Predicated region
  $region10: #{adopt_forward.1} parent=0 // pred_check
    _
  $region11: #{adopt_forward.1} parent=0 // pred_check_branch
    %21 = sbr.rel (0) target = $region13
  $region12: #{adopt_forward.1} parent=0 // pred_region
    _
  $region13: #{adopt_forward.1} parent=0 // pred_fallthru
    _
  // Predicated region
  $region14: #{adopt_forward.1} parent=0 // pred_check
    _
  $region15: #{adopt_forward.1} parent=0 // pred_check_branch
    %23 = sbr.rel (0) target = $region17
  $region16: #{adopt_forward.1} parent=0 // pred_region
    _
  $region17: #{adopt_forward.1} parent=0 // pred_fallthru
    _
  // Predicated region
  $region18: #{adopt_forward.1} parent=0 // pred_check
    _
  $region19: #{adopt_forward.1} parent=0 // pred_check_branch
    %25 = sbr.rel (0) target = $region21
  $region20: #{adopt_forward.1} parent=0 // pred_region
    _
  $region21: #{adopt_forward.1} parent=0 // pred_fallthru
    _
  // Predicated region
  $region22: #{adopt_forward.1} parent=0 // pred_check
    _
  $region23: #{adopt_forward.1} parent=0 // pred_check_branch
    %27 = sbr.rel (0) target = $region25
  $region24: #{adopt_forward.1} parent=0 // pred_region
    _
  $region25: #{adopt_forward.1} parent=0 // pred_fallthru
    _
  // Predicated region
  $region26: #{adopt_forward.1} parent=0 // pred_check
    _
  $region27: #{adopt_forward.1} parent=0 // pred_check_branch
    %29 = sbr.rel (0) target = $region29
  $region28: #{adopt_forward.1} parent=0 // pred_region
    _
  $region29: #{adopt_forward.1} parent=0 // pred_fallthru
    _
  // Predicated region
  $region30: #{adopt_forward.1} parent=0 // pred_check
    _
  $region31: #{adopt_forward.1} parent=0 // pred_check_branch
    %31 = sbr.rel (0) target = $region33
  $region32: #{adopt_forward.1} parent=0 // pred_region
    _
  $region33: #{adopt_forward.1} parent=0 // pred_fallthru
    _
  // Predicated region
  $region34: #{adopt_forward.1} parent=0 // pred_check
    _
  $region35: #{adopt_forward.1} parent=0 // pred_check_branch
    %33 = sbr.rel (0) target = $region37
  $region36: #{adopt_forward.1} parent=0 // pred_region
    _
  $region37: #{adopt_forward.1} parent=0 // pred_fallthru
    _
  %v34 = vld [vmem:[%s0] sm:$0xff]
  %v35 = vld [vmem:[%s0 + $0x8] sm:$0xff]
  %v36 = vld [vmem:[%s0 + $0x10] sm:$0xff]
  %v37 = vld [vmem:[%s0 + $0x18] sm:$0xff]
  %v38 = vld [vmem:[%s0 + $0x20] sm:$0xff]
  %v39 = vld [vmem:[%s0 + $0x28] sm:$0xff]
  %v40 = vld [vmem:[%s0 + $0x30] sm:$0xff]
  %v41 = vld [vmem:[%s0 + $0x38] sm:$0xff]
  %v42 = vld [vmem:[%s1] sm:$0xff]
  %v43 = vld [vmem:[%s1 + $0x8] sm:$0xf]
  %v44 = vld [vmem:[%s2] sm:$0x7]
  %v46 = vlaneseq
  %v47 = vshrl.u32 %v46, 7
  %v48 = vsub.s32 0, %v47
  %v49 = vrot.slane %v44, %v48
  %v50 = vlaneseq
  %v51 = vshrl.u32 %v50, 7
  %v52 = vsub.s32 1, %v51
  %v53 = vrot.slane %v44, %v52
  %v54 = vlaneseq
  %v55 = vshrl.u32 %v54, 7
  %v56 = vsub.s32 2, %v55
  %v57 = vrot.slane %v44, %v56
  %v63 = vcombine.high %v42, %v42
  %vm64 = vcmask 31744
  %v66 = vsel %vm64, %v34, 0
  %v69 = vsel %vm64, %v35, 0
  %v72 = vsel %vm64, %v36, 0
  %v75 = vsel %vm64, %v37, 0
  %v78 = vsel %vm64, %v38, 0
  %v81 = vsel %vm64, %v39, 0
  %v84 = vsel %vm64, %v40, 0
  %v87 = vsel %vm64, %v41, 0
  %vm89 = vcmask 1043456
  %v90 = vsel %vm89, %v42, 0
  %v92 = vsel %vm89, %v63, 0
  %v94 = vsel %vm89, %v43, 0
  %96 = vmatprep.subr.mxu0 %v92
  %97 = vmatpush1.msra.mxu0 %v90
  %98 = vmatprep.subr.mxu0 0.0
  %99 = vmatpush1.msra.mxu0 0.0
  %100 = vmatprep.subr.mxu0 0.0
  %101 = vmatpush1.msra.mxu0 0.0
  %102 = vmatprep.subr.mxu0 0.0
  %103 = vmatpush1.msra.mxu0 0.0
  %104 = vmatprep.subr.mxu0 0.0
  %105 = vmatpush1.msra.mxu0 0.0
  %106 = vmatprep.subr.mxu0 0.0
  %107 = vmatpush1.msra.mxu0 0.0
  %108 = vmatprep.subr.mxu0 0.0
  %109 = vmatpush1.msra.mxu0 0.0
  %110 = vmatprep.subr.mxu0 0.0
  %111 = vmatpush1.msra.mxu0 0.0
  %112 = vmatprep.subr.mxu0 0.0
  %113 = vmatpush1.msra.mxu0 0.0
  %114 = vmatprep.subr.mxu0 0.0
  %115 = vmatpush1.msra.mxu0 0.0
  %116 = vmatprep.subr.mxu0 0.0
  %117 = vmatpush1.msra.mxu0 0.0
  %118 = vmatprep.subr.mxu0 0.0
  %119 = vmatpush1.msra.mxu0 0.0
  %120 = vmatprep.subr.mxu0 0.0
  %121 = vmatpush1.msra.mxu0 0.0
  %122 = vmatprep.subr.mxu0 0.0
  %123 = vmatpush1.msra.mxu0 0.0
  %124 = vmatprep.subr.mxu0 0.0
  %125 = vmatpush1.msra.mxu0 0.0
  %126 = vmatprep.subr.mxu0 0.0
  %127 = vmatpush1.msra.mxu0 0.0
  %128 = vmatprep.subr.mxu0 0.0
  %129 = vmatpush1.msra.mxu0 0.0
  %130 = vmatprep.subr.mxu0 0.0
  %131 = vmatpush1.msra.mxu0 0.0
  %132 = vmatprep.subr.mxu0 0.0
  %133 = vmatpush1.msra.mxu0 0.0
  %134 = vmatprep.subr.mxu0 0.0
  %135 = vmatpush1.msra.mxu0 0.0
  %136 = vmatprep.subr.mxu0 0.0
  %137 = vmatpush1.msra.mxu0 0.0
  %138 = vmatprep.subr.mxu0 0.0
  %139 = vmatpush1.msra.mxu0 0.0
  %140 = vmatprep.subr.mxu0 0.0
  %141 = vmatpush1.msra.mxu0 0.0
  %142 = vmatprep.subr.mxu0 0.0
  %143 = vmatpush1.msra.mxu0 0.0
  %144 = vmatprep.subr.mxu0 0.0
  %145 = vmatpush1.msra.mxu0 0.0
  %146 = vmatprep.subr.mxu0 0.0
  %147 = vmatpush1.msra.mxu0 0.0
  %148 = vmatprep.subr.mxu0 0.0
  %149 = vmatpush1.msra.mxu0 0.0
  %150 = vmatprep.subr.mxu0 0.0
  %151 = vmatpush1.msra.mxu0 0.0
  %152 = vmatprep.subr.mxu0 0.0
  %153 = vmatpush1.msra.mxu0 0.0
  %154 = vmatprep.subr.mxu0 0.0
  %155 = vmatpush1.msra.mxu0 0.0
  %156 = vmatprep.subr.mxu0 0.0
  %157 = vmatpush1.msra.mxu0 0.0
  %158 = vmatprep.subr.mxu0 0.0
  %159 = vmatpush1.msra.mxu0 0.0
  %160 = vmatprep.mubr.f32.mxu0 0.0
  %161 = vmatmul.mubr.f32.gmra.mrb[0].mxu0 %v66
  %v162 = vpop.f32.mrb[0].mxu0
  %v163 = vadd.f32 %v49, %v162
  %v164 = vpop.f32.mrb[0].mxu0
  %v165 = vadd.f32 %v53, %v164
  %166 = vmatprep.mubr.f32.mxu0 0.0
  %167 = vmatmul.mubr.f32.gmra.mrb[0].mxu0 %v69
  %v168 = vpop.f32.mrb[0].mxu0
  %v169 = vadd.f32 %v49, %v168
  %v170 = vpop.f32.mrb[0].mxu0
  %v171 = vadd.f32 %v53, %v170
  %172 = vmatprep.mubr.f32.mxu0 0.0
  %173 = vmatmul.mubr.f32.gmra.mrb[0].mxu0 %v72
  %v174 = vpop.f32.mrb[0].mxu0
  %v175 = vadd.f32 %v49, %v174
  %v176 = vpop.f32.mrb[0].mxu0
  %v177 = vadd.f32 %v53, %v176
  %178 = vmatprep.mubr.f32.mxu0 0.0
  %179 = vmatmul.mubr.f32.gmra.mrb[0].mxu0 %v75
  %v180 = vpop.f32.mrb[0].mxu0
  %v181 = vadd.f32 %v49, %v180
  %v182 = vpop.f32.mrb[0].mxu0
  %v183 = vadd.f32 %v53, %v182
  %184 = vmatprep.mubr.f32.mxu0 0.0
  %185 = vmatmul.mubr.f32.gmra.mrb[0].mxu0 %v78
  %v186 = vpop.f32.mrb[0].mxu0
  %v187 = vadd.f32 %v49, %v186
  %v188 = vpop.f32.mrb[0].mxu0
  %v189 = vadd.f32 %v53, %v188
  %190 = vmatprep.mubr.f32.mxu0 0.0
  %191 = vmatmul.mubr.f32.gmra.mrb[0].mxu0 %v81
  %v192 = vpop.f32.mrb[0].mxu0
  %v193 = vadd.f32 %v49, %v192
  %v194 = vpop.f32.mrb[0].mxu0
  %v195 = vadd.f32 %v53, %v194
  %196 = vmatprep.mubr.f32.mxu0 0.0
  %197 = vmatmul.mubr.f32.gmra.mrb[0].mxu0 %v84
  %v198 = vpop.f32.mrb[0].mxu0
  %v199 = vadd.f32 %v49, %v198
  %v200 = vpop.f32.mrb[0].mxu0
  %v201 = vadd.f32 %v53, %v200
  %202 = vmatprep.mubr.f32.mxu0 0.0
  %203 = vmatmul.mubr.f32.gmra.mrb[0].mxu0 %v87
  %v204 = vpop.f32.mrb[0].mxu0
  %v205 = vadd.f32 %v49, %v204
  %v206 = vpop.f32.mrb[0].mxu0
  %v207 = vadd.f32 %v53, %v206
  %208 = vdwg.mxu0
  %209 = vmatprep.subr.mxu0 0.0
  %210 = vmatpush1.msra.mxu0 %v94
  %211 = vmatprep.subr.mxu0 0.0
  %212 = vmatpush1.msra.mxu0 0.0
  %213 = vmatprep.subr.mxu0 0.0
  %214 = vmatpush1.msra.mxu0 0.0
  %215 = vmatprep.subr.mxu0 0.0
  %216 = vmatpush1.msra.mxu0 0.0
  %217 = vmatprep.subr.mxu0 0.0
  %218 = vmatpush1.msra.mxu0 0.0
  %219 = vmatprep.subr.mxu0 0.0
  %220 = vmatpush1.msra.mxu0 0.0
  %221 = vmatprep.subr.mxu0 0.0
  %222 = vmatpush1.msra.mxu0 0.0
  %223 = vmatprep.subr.mxu0 0.0
  %224 = vmatpush1.msra.mxu0 0.0
  %225 = vmatprep.subr.mxu0 0.0
  %226 = vmatpush1.msra.mxu0 0.0
  %227 = vmatprep.subr.mxu0 0.0
  %228 = vmatpush1.msra.mxu0 0.0
  %229 = vmatprep.subr.mxu0 0.0
  %230 = vmatpush1.msra.mxu0 0.0
  %231 = vmatprep.subr.mxu0 0.0
  %232 = vmatpush1.msra.mxu0 0.0
  %233 = vmatprep.subr.mxu0 0.0
  %234 = vmatpush1.msra.mxu0 0.0
  %235 = vmatprep.subr.mxu0 0.0
  %236 = vmatpush1.msra.mxu0 0.0
  %237 = vmatprep.subr.mxu0 0.0
  %238 = vmatpush1.msra.mxu0 0.0
  %239 = vmatprep.subr.mxu0 0.0
  %240 = vmatpush1.msra.mxu0 0.0
  %241 = vmatprep.subr.mxu0 0.0
  %242 = vmatpush1.msra.mxu0 0.0
  %243 = vmatprep.subr.mxu0 0.0
  %244 = vmatpush1.msra.mxu0 0.0
  %245 = vmatprep.subr.mxu0 0.0
  %246 = vmatpush1.msra.mxu0 0.0
  %247 = vmatprep.subr.mxu0 0.0
  %248 = vmatpush1.msra.mxu0 0.0
  %249 = vmatprep.subr.mxu0 0.0
  %250 = vmatpush1.msra.mxu0 0.0
  %251 = vmatprep.subr.mxu0 0.0
  %252 = vmatpush1.msra.mxu0 0.0
  %253 = vmatprep.subr.mxu0 0.0
  %254 = vmatpush1.msra.mxu0 0.0
  %255 = vmatprep.subr.mxu0 0.0
  %256 = vmatpush1.msra.mxu0 0.0
  %257 = vmatprep.subr.mxu0 0.0
  %258 = vmatpush1.msra.mxu0 0.0
  %259 = vmatprep.subr.mxu0 0.0
  %260 = vmatpush1.msra.mxu0 0.0
  %261 = vmatprep.subr.mxu0 0.0
  %262 = vmatpush1.msra.mxu0 0.0
  %263 = vmatprep.subr.mxu0 0.0
  %264 = vmatpush1.msra.mxu0 0.0
  %265 = vmatprep.subr.mxu0 0.0
  %266 = vmatpush1.msra.mxu0 0.0
  %267 = vmatprep.subr.mxu0 0.0
  %268 = vmatpush1.msra.mxu0 0.0
  %269 = vmatprep.subr.mxu0 0.0
  %270 = vmatpush1.msra.mxu0 0.0
  %271 = vmatprep.subr.mxu0 0.0
  %272 = vmatpush1.msra.mxu0 0.0
  %273 = vmatprep.mubr.f32.mxu0 0.0
  %274 = vmatmul.mubr.f32.gmra.mrb[0].mxu0 %v66
  %v275 = vpop.f32.mrb[0].mxu0
  %v276 = vadd.f32 %v57, %v275
  %v277 = vpop.f32.mrb[0].mxu0
  %278 = vmatprep.mubr.f32.mxu0 0.0
  %279 = vmatmul.mubr.f32.gmra.mrb[0].mxu0 %v69
  %v280 = vpop.f32.mrb[0].mxu0
  %v281 = vadd.f32 %v57, %v280
  %v282 = vpop.f32.mrb[0].mxu0
  %283 = vmatprep.mubr.f32.mxu0 0.0
  %284 = vmatmul.mubr.f32.gmra.mrb[0].mxu0 %v72
  %v285 = vpop.f32.mrb[0].mxu0
  %v286 = vadd.f32 %v57, %v285
  %v287 = vpop.f32.mrb[0].mxu0
  %288 = vmatprep.mubr.f32.mxu0 0.0
  %289 = vmatmul.mubr.f32.gmra.mrb[0].mxu0 %v75
  %v290 = vpop.f32.mrb[0].mxu0
  %v291 = vadd.f32 %v57, %v290
  %v292 = vpop.f32.mrb[0].mxu0
  %293 = vmatprep.mubr.f32.mxu0 0.0
  %294 = vmatmul.mubr.f32.gmra.mrb[0].mxu0 %v78
  %v295 = vpop.f32.mrb[0].mxu0
  %v296 = vadd.f32 %v57, %v295
  %v297 = vpop.f32.mrb[0].mxu0
  %298 = vmatprep.mubr.f32.mxu0 0.0
  %299 = vmatmul.mubr.f32.gmra.mrb[0].mxu0 %v81
  %v300 = vpop.f32.mrb[0].mxu0
  %v301 = vadd.f32 %v57, %v300
  %v302 = vpop.f32.mrb[0].mxu0
  %303 = vmatprep.mubr.f32.mxu0 0.0
  %304 = vmatmul.mubr.f32.gmra.mrb[0].mxu0 %v84
  %v305 = vpop.f32.mrb[0].mxu0
  %v306 = vadd.f32 %v57, %v305
  %v307 = vpop.f32.mrb[0].mxu0
  %308 = vmatprep.mubr.f32.mxu0 0.0
  %309 = vmatmul.mubr.f32.gmra.mrb[0].mxu0 %v87
  %v310 = vpop.f32.mrb[0].mxu0
  %v311 = vadd.f32 %v57, %v310
  %v312 = vpop.f32.mrb[0].mxu0
  %313 = vdwg.mxu0
  %314 = vst [vmem:[#allocation2] sm:$0xff] %v163
  %315 = vst [vmem:[#allocation2 + $0x8] sm:$0xff] %v165
  %316 = vst [vmem:[#allocation2 + $0x10] sm:$0xff] %v276
  %317 = vst [vmem:[#allocation2 + $0x18] sm:$0xff] %v169
  %318 = vst [vmem:[#allocation2 + $0x20] sm:$0xff] %v171
  %319 = vst [vmem:[#allocation2 + $0x28] sm:$0xff] %v281
  %320 = vst [vmem:[#allocation2 + $0x30] sm:$0xff] %v175
  %321 = vst [vmem:[#allocation2 + $0x38] sm:$0xff] %v177
  %322 = vst [vmem:[#allocation2 + $0x40] sm:$0xff] %v286
  %323 = vst [vmem:[#allocation2 + $0x48] sm:$0xff] %v181
  %324 = vst [vmem:[#allocation2 + $0x50] sm:$0xff] %v183
  %325 = vst [vmem:[#allocation2 + $0x58] sm:$0xff] %v291
  %326 = vst [vmem:[#allocation2 + $0x60] sm:$0xff] %v187
  %327 = vst [vmem:[#allocation2 + $0x68] sm:$0xff] %v189
  %328 = vst [vmem:[#allocation2 + $0x70] sm:$0xff] %v296
  %329 = vst [vmem:[#allocation2 + $0x78] sm:$0xff] %v193
  %330 = vst [vmem:[#allocation2 + $0x80] sm:$0xff] %v195
  %331 = vst [vmem:[#allocation2 + $0x88] sm:$0xff] %v301
  %332 = vst [vmem:[#allocation2 + $0x90] sm:$0xff] %v199
  %333 = vst [vmem:[#allocation2 + $0x98] sm:$0xff] %v201
  %334 = vst [vmem:[#allocation2 + $0xa0] sm:$0xff] %v306
  %335 = vst [vmem:[#allocation2 + $0xa8] sm:$0xff] %v205
  %336 = vst [vmem:[#allocation2 + $0xb0] sm:$0xff] %v207
  %337 = vst [vmem:[#allocation2 + $0xb8] sm:$0xff] %v311
  %v338 = vld [vmem:[%s3] sm:$0xff]
  %v339 = vld [vmem:[%s3 + $0x8] sm:$0xff]
  %v340 = vld [vmem:[%s3 + $0x10] sm:$0xff]
  %v341 = vld [vmem:[%s3 + $0x18] sm:$0xff]
  %v342 = vld [vmem:[%s3 + $0x20] sm:$0xff]
  %v343 = vld [vmem:[%s3 + $0x28] sm:$0xff]
  %v344 = vld [vmem:[%s3 + $0x30] sm:$0xff]
  %v345 = vld [vmem:[%s3 + $0x38] sm:$0xff]
  %v346 = vld [vmem:[%s3 + $0x40] sm:$0xff]
  %v347 = vld [vmem:[%s3 + $0x48] sm:$0xff]
  %v348 = vld [vmem:[%s3 + $0x50] sm:$0xff]
  %v349 = vld [vmem:[%s3 + $0x58] sm:$0xff]
  %v350 = vld [vmem:[%s3 + $0x60] sm:$0xff]
  %v351 = vld [vmem:[%s3 + $0x68] sm:$0xff]
  %v352 = vld [vmem:[%s3 + $0x70] sm:$0xff]
  %v353 = vld [vmem:[%s3 + $0x78] sm:$0xff]
  %v354 = vld [vmem:[%s3 + $0x80] sm:$0xff]
  %v355 = vld [vmem:[%s3 + $0x88] sm:$0xff]
  %v356 = vld [vmem:[%s3 + $0x90] sm:$0xff]
  %v357 = vld [vmem:[%s3 + $0x98] sm:$0xff]
  %v358 = vld [vmem:[%s3 + $0xa0] sm:$0xff]
  %v359 = vld [vmem:[%s3 + $0xa8] sm:$0xff]
  %v360 = vld [vmem:[%s3 + $0xb0] sm:$0xff]
  %v361 = vld [vmem:[%s3 + $0xb8] sm:$0xff]
  %v362 = vld [vmem:[%s3 + $0xc0] sm:$0xff]
  %v363 = vld [vmem:[%s3 + $0xc8] sm:$0xff]
  %v364 = vld [vmem:[%s3 + $0xd0] sm:$0xff]
  %v365 = vld [vmem:[%s3 + $0xd8] sm:$0xff]
  %v366 = vld [vmem:[%s3 + $0xe0] sm:$0xff]
  %v367 = vld [vmem:[%s3 + $0xe8] sm:$0xff]
  %v368 = vld [vmem:[%s3 + $0xf0] sm:$0xff]
  %v369 = vld [vmem:[%s3 + $0xf8] sm:$0xff]
  %v370 = vld [vmem:[%s3 + $0x100] sm:$0xff]
  %v371 = vld [vmem:[%s3 + $0x108] sm:$0xff]
  %v372 = vld [vmem:[%s3 + $0x110] sm:$0xff]
  %v373 = vld [vmem:[%s3 + $0x118] sm:$0xff]
  %v374 = vld [vmem:[%s3 + $0x120] sm:$0xff]
  %v375 = vld [vmem:[%s3 + $0x128] sm:$0xff]
  %v376 = vld [vmem:[%s3 + $0x130] sm:$0xff]
  %v377 = vld [vmem:[%s3 + $0x138] sm:$0xff]
  %v378 = vld [vmem:[%s3 + $0x140] sm:$0xff]
  %v379 = vld [vmem:[%s3 + $0x148] sm:$0xff]
  %v380 = vld [vmem:[%s3 + $0x150] sm:$0xff]
  %v381 = vld [vmem:[%s3 + $0x158] sm:$0xff]
  %v382 = vld [vmem:[%s3 + $0x160] sm:$0xff]
  %v383 = vld [vmem:[%s3 + $0x168] sm:$0xff]
  %v384 = vld [vmem:[%s3 + $0x170] sm:$0xff]
  %v385 = vld [vmem:[%s3 + $0x178] sm:$0xff]
  %v386 = vld [vmem:[%s4] sm:$0x1]
  %v387 = vld [vmem:[#allocation2] sm:$0xff]
  %v388 = vld [vmem:[#allocation2 + $0x8] sm:$0xff]
  %v389 = vld [vmem:[#allocation2 + $0x10] sm:$0xff]
  %390 = vmatprep.subr.mxu0 %v339
  %391 = vmatpush1.msra.mxu0 %v338
  %392 = vmatprep.subr.mxu0 %v342
  %393 = vmatpush1.msra.mxu0 %v341
  %394 = vmatprep.subr.mxu0 %v345
  %395 = vmatpush1.msra.mxu0 %v344
  %396 = vmatprep.subr.mxu0 %v348
  %397 = vmatpush1.msra.mxu0 %v347
  %398 = vmatprep.subr.mxu0 %v351
  %399 = vmatpush1.msra.mxu0 %v350
  %400 = vmatprep.subr.mxu0 %v354
  %401 = vmatpush1.msra.mxu0 %v353
  %402 = vmatprep.subr.mxu0 %v357
  %403 = vmatpush1.msra.mxu0 %v356
  %404 = vmatprep.subr.mxu0 %v360
  %405 = vmatpush1.msra.mxu0 %v359
  %406 = vmatprep.subr.mxu0 %v363
  %407 = vmatpush1.msra.mxu0 %v362
  %408 = vmatprep.subr.mxu0 %v366
  %409 = vmatpush1.msra.mxu0 %v365
  %410 = vmatprep.subr.mxu0 %v369
  %411 = vmatpush1.msra.mxu0 %v368
  %412 = vmatprep.subr.mxu0 %v372
  %413 = vmatpush1.msra.mxu0 %v371
  %414 = vmatprep.subr.mxu0 %v375
  %415 = vmatpush1.msra.mxu0 %v374
  %416 = vmatprep.subr.mxu0 %v378
  %417 = vmatpush1.msra.mxu0 %v377
  %418 = vmatprep.subr.mxu0 %v381
  %419 = vmatpush1.msra.mxu0 %v380
  %420 = vmatprep.subr.mxu0 %v384
  %421 = vmatpush1.msra.mxu0 %v383
  %422 = vmatprep.subr.mxu0 0.0
  %423 = vmatpush1.msra.mxu0 0.0
  %424 = vmatprep.subr.mxu0 0.0
  %425 = vmatpush1.msra.mxu0 0.0
  %426 = vmatprep.subr.mxu0 0.0
  %427 = vmatpush1.msra.mxu0 0.0
  %428 = vmatprep.subr.mxu0 0.0
  %429 = vmatpush1.msra.mxu0 0.0
  %430 = vmatprep.subr.mxu0 0.0
  %431 = vmatpush1.msra.mxu0 0.0
  %432 = vmatprep.subr.mxu0 0.0
  %433 = vmatpush1.msra.mxu0 0.0
  %434 = vmatprep.subr.mxu0 0.0
  %435 = vmatpush1.msra.mxu0 0.0
  %436 = vmatprep.subr.mxu0 0.0
  %437 = vmatpush1.msra.mxu0 0.0
  %438 = vmatprep.subr.mxu0 0.0
  %439 = vmatpush1.msra.mxu0 0.0
  %440 = vmatprep.subr.mxu0 0.0
  %441 = vmatpush1.msra.mxu0 0.0
  %442 = vmatprep.subr.mxu0 0.0
  %443 = vmatpush1.msra.mxu0 0.0
  %444 = vmatprep.subr.mxu0 0.0
  %445 = vmatpush1.msra.mxu0 0.0
  %446 = vmatprep.subr.mxu0 0.0
  %447 = vmatpush1.msra.mxu0 0.0
  %448 = vmatprep.subr.mxu0 0.0
  %449 = vmatpush1.msra.mxu0 0.0
  %450 = vmatprep.subr.mxu0 0.0
  %451 = vmatpush1.msra.mxu0 0.0
  %452 = vmatprep.subr.mxu0 0.0
  %453 = vmatpush1.msra.mxu0 0.0
  %454 = vmatprep.mubr.f32.mxu0 0.0
  %455 = vmatmul.mubr.f32.gmra.mrb[0].mxu0 0.0
  %v456 = vpop.f32.mrb[0].mxu0
  %v457 = vadd.f32 0.0, %v456
  %v458 = vpop.f32.mrb[0].mxu0
  %v459 = vadd.f32 0.0, %v458
  %460 = vdwg.mxu0
  %461 = vmatprep.subr.mxu0 0.0
  %462 = vmatpush1.msra.mxu0 %v340
  %463 = vmatprep.subr.mxu0 0.0
  %464 = vmatpush1.msra.mxu0 %v343
  %465 = vmatprep.subr.mxu0 0.0
  %466 = vmatpush1.msra.mxu0 %v346
  %467 = vmatprep.subr.mxu0 0.0
  %468 = vmatpush1.msra.mxu0 %v349
  %469 = vmatprep.subr.mxu0 0.0
  %470 = vmatpush1.msra.mxu0 %v352
  %471 = vmatprep.subr.mxu0 0.0
  %472 = vmatpush1.msra.mxu0 %v355
  %473 = vmatprep.subr.mxu0 0.0
  %474 = vmatpush1.msra.mxu0 %v358
  %475 = vmatprep.subr.mxu0 0.0
  %476 = vmatpush1.msra.mxu0 %v361
  %477 = vmatprep.subr.mxu0 0.0
  %478 = vmatpush1.msra.mxu0 %v364
  %479 = vmatprep.subr.mxu0 0.0
  %480 = vmatpush1.msra.mxu0 %v367
  %481 = vmatprep.subr.mxu0 0.0
  %482 = vmatpush1.msra.mxu0 %v370
  %483 = vmatprep.subr.mxu0 0.0
  %484 = vmatpush1.msra.mxu0 %v373
  %485 = vmatprep.subr.mxu0 0.0
  %486 = vmatpush1.msra.mxu0 %v376
  %487 = vmatprep.subr.mxu0 0.0
  %488 = vmatpush1.msra.mxu0 %v379
  %489 = vmatprep.subr.mxu0 0.0
  %490 = vmatpush1.msra.mxu0 %v382
  %491 = vmatprep.subr.mxu0 0.0
  %492 = vmatpush1.msra.mxu0 %v385
  %493 = vmatprep.subr.mxu0 0.0
  %494 = vmatpush1.msra.mxu0 0.0
  %495 = vmatprep.subr.mxu0 0.0
  %496 = vmatpush1.msra.mxu0 0.0
  %497 = vmatprep.subr.mxu0 0.0
  %498 = vmatpush1.msra.mxu0 0.0
  %499 = vmatprep.subr.mxu0 0.0
  %500 = vmatpush1.msra.mxu0 0.0
  %501 = vmatprep.subr.mxu0 0.0
  %502 = vmatpush1.msra.mxu0 0.0
  %503 = vmatprep.subr.mxu0 0.0
  %504 = vmatpush1.msra.mxu0 0.0
  %505 = vmatprep.subr.mxu0 0.0
  %506 = vmatpush1.msra.mxu0 0.0
  %507 = vmatprep.subr.mxu0 0.0
  %508 = vmatpush1.msra.mxu0 0.0
  %509 = vmatprep.subr.mxu0 0.0
  %510 = vmatpush1.msra.mxu0 0.0
  %511 = vmatprep.subr.mxu0 0.0
  %512 = vmatpush1.msra.mxu0 0.0
  %513 = vmatprep.subr.mxu0 0.0
  %514 = vmatpush1.msra.mxu0 0.0
  %515 = vmatprep.subr.mxu0 0.0
  %516 = vmatpush1.msra.mxu0 0.0
  %517 = vmatprep.subr.mxu0 0.0
  %518 = vmatpush1.msra.mxu0 0.0
  %519 = vmatprep.subr.mxu0 0.0
  %520 = vmatpush1.msra.mxu0 0.0
  %521 = vmatprep.subr.mxu0 0.0
  %522 = vmatpush1.msra.mxu0 0.0
  %523 = vmatprep.subr.mxu0 0.0
  %524 = vmatpush1.msra.mxu0 0.0
  %525 = vmatprep.mubr.f32.mxu0 0.0
  %526 = vmatmul.mubr.f32.gmra.mrb[0].mxu0 0.0
  %v527 = vpop.f32.mrb[0].mxu0
  %v528 = vadd.f32 0.0, %v527
  %v529 = vpop.f32.mrb[0].mxu0
  %530 = vdwg.mxu0
  %v531 = vadd.f32 %v387, %v457
  %v532 = vxor.u32 %v531, 2147483648
  %v533 = vmul.f32 %v532, 1.442695
  %v534 = vpow.pop %v533
  %v535 = vadd.f32 %v534, 1.0
  %v536 = vrcp.pop %v535
  %v537 = vmul.f32 1.0, %v536
  %v538 = vadd.f32 %v388, %v459
  %v539 = vxor.u32 %v538, 2147483648
  %v540 = vmul.f32 %v539, 1.442695
  %v541 = vpow.pop %v540
  %v542 = vadd.f32 %v541, 1.0
  %v543 = vrcp.pop %v542
  %v544 = vmul.f32 1.0, %v543
  %v546 = vlaneseq
  %v547 = vshrl.u32 %v546, 7
  %v548 = vsub.s32 0, %v547
  %v549 = vrot.slane %v386, %v548
  %v551 = vadd.f32 %v528, %v549
  %v552 = vmul.f32 %v537, %v551
  %v553 = vadd.f32 %v389, %v552
  %v554 = vtanh.pop %v553
  %v555 = vsub.f32 1.0, %v544
  %v556 = vmul.f32 %v555, %v554
  %v557 = vmul.f32 %v544, 0.0
  %v558 = vadd.f32 %v556, %v557
  %559 = vst [vmem:[#allocation3] sm:$0xff] %v558
  %v560 = vld [vmem:[#allocation2 + $0x18] sm:$0xff]
  %v561 = vld [vmem:[#allocation2 + $0x20] sm:$0xff]
  %v562 = vld [vmem:[#allocation2 + $0x28] sm:$0xff]
  %563 = vmatprep.subr.mxu0 %v339
  %564 = vmatpush1.msra.mxu0 %v338
  %565 = vmatprep.subr.mxu0 %v342
  %566 = vmatpush1.msra.mxu0 %v341
  %567 = vmatprep.subr.mxu0 %v345
  %568 = vmatpush1.msra.mxu0 %v344
  %569 = vmatprep.subr.mxu0 %v348
  %570 = vmatpush1.msra.mxu0 %v347
  %571 = vmatprep.subr.mxu0 %v351
  %572 = vmatpush1.msra.mxu0 %v350
  %573 = vmatprep.subr.mxu0 %v354
  %574 = vmatpush1.msra.mxu0 %v353
  %575 = vmatprep.subr.mxu0 %v357
  %576 = vmatpush1.msra.mxu0 %v356
  %577 = vmatprep.subr.mxu0 %v360
  %578 = vmatpush1.msra.mxu0 %v359
  %579 = vmatprep.subr.mxu0 %v363
  %580 = vmatpush1.msra.mxu0 %v362
  %581 = vmatprep.subr.mxu0 %v366
  %582 = vmatpush1.msra.mxu0 %v365
  %583 = vmatprep.subr.mxu0 %v369
  %584 = vmatpush1.msra.mxu0 %v368
  %585 = vmatprep.subr.mxu0 %v372
  %586 = vmatpush1.msra.mxu0 %v371
  %587 = vmatprep.subr.mxu0 %v375
  %588 = vmatpush1.msra.mxu0 %v374
  %589 = vmatprep.subr.mxu0 %v378
  %590 = vmatpush1.msra.mxu0 %v377
  %591 = vmatprep.subr.mxu0 %v381
  %592 = vmatpush1.msra.mxu0 %v380
  %593 = vmatprep.subr.mxu0 %v384
  %594 = vmatpush1.msra.mxu0 %v383
  %595 = vmatprep.subr.mxu0 0.0
  %596 = vmatpush1.msra.mxu0 0.0
  %597 = vmatprep.subr.mxu0 0.0
  %598 = vmatpush1.msra.mxu0 0.0
  %599 = vmatprep.subr.mxu0 0.0
  %600 = vmatpush1.msra.mxu0 0.0
  %601 = vmatprep.subr.mxu0 0.0
  %602 = vmatpush1.msra.mxu0 0.0
  %603 = vmatprep.subr.mxu0 0.0
  %604 = vmatpush1.msra.mxu0 0.0
  %605 = vmatprep.subr.mxu0 0.0
  %606 = vmatpush1.msra.mxu0 0.0
  %607 = vmatprep.subr.mxu0 0.0
  %608 = vmatpush1.msra.mxu0 0.0
  %609 = vmatprep.subr.mxu0 0.0
  %610 = vmatpush1.msra.mxu0 0.0
  %611 = vmatprep.subr.mxu0 0.0
  %612 = vmatpush1.msra.mxu0 0.0
  %613 = vmatprep.subr.mxu0 0.0
  %614 = vmatpush1.msra.mxu0 0.0
  %615 = vmatprep.subr.mxu0 0.0
  %616 = vmatpush1.msra.mxu0 0.0
  %617 = vmatprep.subr.mxu0 0.0
  %618 = vmatpush1.msra.mxu0 0.0
  %619 = vmatprep.subr.mxu0 0.0
  %620 = vmatpush1.msra.mxu0 0.0
  %621 = vmatprep.subr.mxu0 0.0
  %622 = vmatpush1.msra.mxu0 0.0
  %623 = vmatprep.subr.mxu0 0.0
  %624 = vmatpush1.msra.mxu0 0.0
  %625 = vmatprep.subr.mxu0 0.0
  %626 = vmatpush1.msra.mxu0 0.0
  %627 = vmatprep.mubr.f32.mxu0 0.0
  %628 = vmatmul.mubr.f32.gmra.mrb[0].mxu0 %v558
  %v629 = vpop.f32.mrb[0].mxu0
  %v630 = vadd.f32 0.0, %v629
  %v631 = vpop.f32.mrb[0].mxu0
  %v632 = vadd.f32 0.0, %v631
  %633 = vdwg.mxu0
  %634 = vmatprep.subr.mxu0 0.0
  %635 = vmatpush1.msra.mxu0 %v340
  %636 = vmatprep.subr.mxu0 0.0
  %637 = vmatpush1.msra.mxu0 %v343
  %638 = vmatprep.subr.mxu0 0.0
  %639 = vmatpush1.msra.mxu0 %v346
  %640 = vmatprep.subr.mxu0 0.0
  %641 = vmatpush1.msra.mxu0 %v349
  %642 = vmatprep.subr.mxu0 0.0
  %643 = vmatpush1.msra.mxu0 %v352
  %644 = vmatprep.subr.mxu0 0.0
  %645 = vmatpush1.msra.mxu0 %v355
  %646 = vmatprep.subr.mxu0 0.0
  %647 = vmatpush1.msra.mxu0 %v358
  %648 = vmatprep.subr.mxu0 0.0
  %649 = vmatpush1.msra.mxu0 %v361
  %650 = vmatprep.subr.mxu0 0.0
  %651 = vmatpush1.msra.mxu0 %v364
  %652 = vmatprep.subr.mxu0 0.0
  %653 = vmatpush1.msra.mxu0 %v367
  %654 = vmatprep.subr.mxu0 0.0
  %655 = vmatpush1.msra.mxu0 %v370
  %656 = vmatprep.subr.mxu0 0.0
  %657 = vmatpush1.msra.mxu0 %v373
  %658 = vmatprep.subr.mxu0 0.0
  %659 = vmatpush1.msra.mxu0 %v376
  %660 = vmatprep.subr.mxu0 0.0
  %661 = vmatpush1.msra.mxu0 %v379
  %662 = vmatprep.subr.mxu0 0.0
  %663 = vmatpush1.msra.mxu0 %v382
  %664 = vmatprep.subr.mxu0 0.0
  %665 = vmatpush1.msra.mxu0 %v385
  %666 = vmatprep.subr.mxu0 0.0
  %667 = vmatpush1.msra.mxu0 0.0
  %668 = vmatprep.subr.mxu0 0.0
  %669 = vmatpush1.msra.mxu0 0.0
  %670 = vmatprep.subr.mxu0 0.0
  %671 = vmatpush1.msra.mxu0 0.0
  %672 = vmatprep.subr.mxu0 0.0
  %673 = vmatpush1.msra.mxu0 0.0
  %674 = vmatprep.subr.mxu0 0.0
  %675 = vmatpush1.msra.mxu0 0.0
  %676 = vmatprep.subr.mxu0 0.0
  %677 = vmatpush1.msra.mxu0 0.0
  %678 = vmatprep.subr.mxu0 0.0
  %679 = vmatpush1.msra.mxu0 0.0
  %680 = vmatprep.subr.mxu0 0.0
  %681 = vmatpush1.msra.mxu0 0.0
  %682 = vmatprep.subr.mxu0 0.0
  %683 = vmatpush1.msra.mxu0 0.0
  %684 = vmatprep.subr.mxu0 0.0
  %685 = vmatpush1.msra.mxu0 0.0
  %686 = vmatprep.subr.mxu0 0.0
  %687 = vmatpush1.msra.mxu0 0.0
  %688 = vmatprep.subr.mxu0 0.0
  %689 = vmatpush1.msra.mxu0 0.0
  %690 = vmatprep.subr.mxu0 0.0
  %691 = vmatpush1.msra.mxu0 0.0
  %692 = vmatprep.subr.mxu0 0.0
  %693 = vmatpush1.msra.mxu0 0.0
  %694 = vmatprep.subr.mxu0 0.0
  %695 = vmatpush1.msra.mxu0 0.0
  %696 = vmatprep.subr.mxu0 0.0
  %697 = vmatpush1.msra.mxu0 0.0
  %698 = vmatprep.mubr.f32.mxu0 0.0
  %699 = vmatmul.mubr.f32.gmra.mrb[0].mxu0 %v558
  %v700 = vpop.f32.mrb[0].mxu0
  %v701 = vadd.f32 0.0, %v700
  %v702 = vpop.f32.mrb[0].mxu0
  %703 = vdwg.mxu0
  %v704 = vadd.f32 %v560, %v630
  %v705 = vxor.u32 %v704, 2147483648
  %v706 = vmul.f32 %v705, 1.442695
  %v707 = vpow.pop %v706
  %v708 = vadd.f32 %v707, 1.0
  %v709 = vrcp.pop %v708
  %v710 = vmul.f32 1.0, %v709
  %v711 = vadd.f32 %v561, %v632
  %v712 = vxor.u32 %v711, 2147483648
  %v713 = vmul.f32 %v712, 1.442695
  %v714 = vpow.pop %v713
  %v715 = vadd.f32 %v714, 1.0
  %v716 = vrcp.pop %v715
  %v717 = vmul.f32 1.0, %v716
  %v718 = vadd.f32 %v701, %v549
  %v719 = vmul.f32 %v710, %v718
  %v720 = vadd.f32 %v562, %v719
  %v721 = vtanh.pop %v720
  %v722 = vsub.f32 1.0, %v717
  %v723 = vmul.f32 %v722, %v721
  %v724 = vmul.f32 %v717, %v558
  %v725 = vadd.f32 %v723, %v724
  %726 = vst [vmem:[#allocation3 + $0x8] sm:$0xff] %v725
  %v727 = vld [vmem:[#allocation2 + $0x30] sm:$0xff]
  %v728 = vld [vmem:[#allocation2 + $0x38] sm:$0xff]
  %v729 = vld [vmem:[#allocation2 + $0x40] sm:$0xff]
  %730 = vmatprep.subr.mxu0 %v339
  %731 = vmatpush1.msra.mxu0 %v338
  %732 = vmatprep.subr.mxu0 %v342
  %733 = vmatpush1.msra.mxu0 %v341
  %734 = vmatprep.subr.mxu0 %v345
  %735 = vmatpush1.msra.mxu0 %v344
  %736 = vmatprep.subr.mxu0 %v348
  %737 = vmatpush1.msra.mxu0 %v347
  %738 = vmatprep.subr.mxu0 %v351
  %739 = vmatpush1.msra.mxu0 %v350
  %740 = vmatprep.subr.mxu0 %v354
  %741 = vmatpush1.msra.mxu0 %v353
  %742 = vmatprep.subr.mxu0 %v357
  %743 = vmatpush1.msra.mxu0 %v356
  %744 = vmatprep.subr.mxu0 %v360
  %745 = vmatpush1.msra.mxu0 %v359
  %746 = vmatprep.subr.mxu0 %v363
  %747 = vmatpush1.msra.mxu0 %v362
  %748 = vmatprep.subr.mxu0 %v366
  %749 = vmatpush1.msra.mxu0 %v365
  %750 = vmatprep.subr.mxu0 %v369
  %751 = vmatpush1.msra.mxu0 %v368
  %752 = vmatprep.subr.mxu0 %v372
  %753 = vmatpush1.msra.mxu0 %v371
  %754 = vmatprep.subr.mxu0 %v375
  %755 = vmatpush1.msra.mxu0 %v374
  %756 = vmatprep.subr.mxu0 %v378
  %757 = vmatpush1.msra.mxu0 %v377
  %758 = vmatprep.subr.mxu0 %v381
  %759 = vmatpush1.msra.mxu0 %v380
  %760 = vmatprep.subr.mxu0 %v384
  %761 = vmatpush1.msra.mxu0 %v383
  %762 = vmatprep.subr.mxu0 0.0
  %763 = vmatpush1.msra.mxu0 0.0
  %764 = vmatprep.subr.mxu0 0.0
  %765 = vmatpush1.msra.mxu0 0.0
  %766 = vmatprep.subr.mxu0 0.0
  %767 = vmatpush1.msra.mxu0 0.0
  %768 = vmatprep.subr.mxu0 0.0
  %769 = vmatpush1.msra.mxu0 0.0
  %770 = vmatprep.subr.mxu0 0.0
  %771 = vmatpush1.msra.mxu0 0.0
  %772 = vmatprep.subr.mxu0 0.0
  %773 = vmatpush1.msra.mxu0 0.0
  %774 = vmatprep.subr.mxu0 0.0
  %775 = vmatpush1.msra.mxu0 0.0
  %776 = vmatprep.subr.mxu0 0.0
  %777 = vmatpush1.msra.mxu0 0.0
  %778 = vmatprep.subr.mxu0 0.0
  %779 = vmatpush1.msra.mxu0 0.0
  %780 = vmatprep.subr.mxu0 0.0
  %781 = vmatpush1.msra.mxu0 0.0
  %782 = vmatprep.subr.mxu0 0.0
  %783 = vmatpush1.msra.mxu0 0.0
  %784 = vmatprep.subr.mxu0 0.0
  %785 = vmatpush1.msra.mxu0 0.0
  %786 = vmatprep.subr.mxu0 0.0
  %787 = vmatpush1.msra.mxu0 0.0
  %788 = vmatprep.subr.mxu0 0.0
  %789 = vmatpush1.msra.mxu0 0.0
  %790 = vmatprep.subr.mxu0 0.0
  %791 = vmatpush1.msra.mxu0 0.0
  %792 = vmatprep.subr.mxu0 0.0
  %793 = vmatpush1.msra.mxu0 0.0
  %794 = vmatprep.mubr.f32.mxu0 0.0
  %795 = vmatmul.mubr.f32.gmra.mrb[0].mxu0 %v725
  %v796 = vpop.f32.mrb[0].mxu0
  %v797 = vadd.f32 0.0, %v796
  %v798 = vpop.f32.mrb[0].mxu0
  %v799 = vadd.f32 0.0, %v798
  %800 = vdwg.mxu0
  %801 = vmatprep.subr.mxu0 0.0
  %802 = vmatpush1.msra.mxu0 %v340
  %803 = vmatprep.subr.mxu0 0.0
  %804 = vmatpush1.msra.mxu0 %v343
  %805 = vmatprep.subr.mxu0 0.0
  %806 = vmatpush1.msra.mxu0 %v346
  %807 = vmatprep.subr.mxu0 0.0
  %808 = vmatpush1.msra.mxu0 %v349
  %809 = vmatprep.subr.mxu0 0.0
  %810 = vmatpush1.msra.mxu0 %v352
  %811 = vmatprep.subr.mxu0 0.0
  %812 = vmatpush1.msra.mxu0 %v355
  %813 = vmatprep.subr.mxu0 0.0
  %814 = vmatpush1.msra.mxu0 %v358
  %815 = vmatprep.subr.mxu0 0.0
  %816 = vmatpush1.msra.mxu0 %v361
  %817 = vmatprep.subr.mxu0 0.0
  %818 = vmatpush1.msra.mxu0 %v364
  %819 = vmatprep.subr.mxu0 0.0
  %820 = vmatpush1.msra.mxu0 %v367
  %821 = vmatprep.subr.mxu0 0.0
  %822 = vmatpush1.msra.mxu0 %v370
  %823 = vmatprep.subr.mxu0 0.0
  %824 = vmatpush1.msra.mxu0 %v373
  %825 = vmatprep.subr.mxu0 0.0
  %826 = vmatpush1.msra.mxu0 %v376
  %827 = vmatprep.subr.mxu0 0.0
  %828 = vmatpush1.msra.mxu0 %v379
  %829 = vmatprep.subr.mxu0 0.0
  %830 = vmatpush1.msra.mxu0 %v382
  %831 = vmatprep.subr.mxu0 0.0
  %832 = vmatpush1.msra.mxu0 %v385
  %833 = vmatprep.subr.mxu0 0.0
  %834 = vmatpush1.msra.mxu0 0.0
  %835 = vmatprep.subr.mxu0 0.0
  %836 = vmatpush1.msra.mxu0 0.0
  %837 = vmatprep.subr.mxu0 0.0
  %838 = vmatpush1.msra.mxu0 0.0
  %839 = vmatprep.subr.mxu0 0.0
  %840 = vmatpush1.msra.mxu0 0.0
  %841 = vmatprep.subr.mxu0 0.0
  %842 = vmatpush1.msra.mxu0 0.0
  %843 = vmatprep.subr.mxu0 0.0
  %844 = vmatpush1.msra.mxu0 0.0
  %845 = vmatprep.subr.mxu0 0.0
  %846 = vmatpush1.msra.mxu0 0.0
  %847 = vmatprep.subr.mxu0 0.0
  %848 = vmatpush1.msra.mxu0 0.0
  %849 = vmatprep.subr.mxu0 0.0
  %850 = vmatpush1.msra.mxu0 0.0
  %851 = vmatprep.subr.mxu0 0.0
  %852 = vmatpush1.msra.mxu0 0.0
  %853 = vmatprep.subr.mxu0 0.0
  %854 = vmatpush1.msra.mxu0 0.0
  %855 = vmatprep.subr.mxu0 0.0
  %856 = vmatpush1.msra.mxu0 0.0
  %857 = vmatprep.subr.mxu0 0.0
  %858 = vmatpush1.msra.mxu0 0.0
  %859 = vmatprep.subr.mxu0 0.0
  %860 = vmatpush1.msra.mxu0 0.0
  %861 = vmatprep.subr.mxu0 0.0
  %862 = vmatpush1.msra.mxu0 0.0
  %863 = vmatprep.subr.mxu0 0.0
  %864 = vmatpush1.msra.mxu0 0.0
  %865 = vmatprep.mubr.f32.mxu0 0.0
  %866 = vmatmul.mubr.f32.gmra.mrb[0].mxu0 %v725
  %v867 = vpop.f32.mrb[0].mxu0
  %v868 = vadd.f32 0.0, %v867
  %v869 = vpop.f32.mrb[0].mxu0
  %870 = vdwg.mxu0
  %v871 = vadd.f32 %v727, %v797
  %v872 = vxor.u32 %v871, 2147483648
  %v873 = vmul.f32 %v872, 1.442695
  %v874 = vpow.pop %v873
  %v875 = vadd.f32 %v874, 1.0
  %v876 = vrcp.pop %v875
  %v877 = vmul.f32 1.0, %v876
  %v878 = vadd.f32 %v728, %v799
  %v879 = vxor.u32 %v878, 2147483648
  %v880 = vmul.f32 %v879, 1.442695
  %v881 = vpow.pop %v880
  %v882 = vadd.f32 %v881, 1.0
  %v883 = vrcp.pop %v882
  %v884 = vmul.f32 1.0, %v883
  %v885 = vadd.f32 %v868, %v549
  %v886 = vmul.f32 %v877, %v885
  %v887 = vadd.f32 %v729, %v886
  %v888 = vtanh.pop %v887
  %v889 = vsub.f32 1.0, %v884
  %v890 = vmul.f32 %v889, %v888
  %v891 = vmul.f32 %v884, %v725
  %v892 = vadd.f32 %v890, %v891
  %893 = vst [vmem:[#allocation3 + $0x10] sm:$0xff] %v892
  %v894 = vld [vmem:[#allocation2 + $0x48] sm:$0xff]
  %v895 = vld [vmem:[#allocation2 + $0x50] sm:$0xff]
  %v896 = vld [vmem:[#allocation2 + $0x58] sm:$0xff]
  %897 = vmatprep.subr.mxu0 %v339
  %898 = vmatpush1.msra.mxu0 %v338
  %899 = vmatprep.subr.mxu0 %v342
  %900 = vmatpush1.msra.mxu0 %v341
  %901 = vmatprep.subr.mxu0 %v345
  %902 = vmatpush1.msra.mxu0 %v344
  %903 = vmatprep.subr.mxu0 %v348
  %904 = vmatpush1.msra.mxu0 %v347
  %905 = vmatprep.subr.mxu0 %v351
  %906 = vmatpush1.msra.mxu0 %v350
  %907 = vmatprep.subr.mxu0 %v354
  %908 = vmatpush1.msra.mxu0 %v353
  %909 = vmatprep.subr.mxu0 %v357
  %910 = vmatpush1.msra.mxu0 %v356
  %911 = vmatprep.subr.mxu0 %v360
  %912 = vmatpush1.msra.mxu0 %v359
  %913 = vmatprep.subr.mxu0 %v363
  %914 = vmatpush1.msra.mxu0 %v362
  %915 = vmatprep.subr.mxu0 %v366
  %916 = vmatpush1.msra.mxu0 %v365
  %917 = vmatprep.subr.mxu0 %v369
  %918 = vmatpush1.msra.mxu0 %v368
  %919 = vmatprep.subr.mxu0 %v372
  %920 = vmatpush1.msra.mxu0 %v371
  %921 = vmatprep.subr.mxu0 %v375
  %922 = vmatpush1.msra.mxu0 %v374
  %923 = vmatprep.subr.mxu0 %v378
  %924 = vmatpush1.msra.mxu0 %v377
  %925 = vmatprep.subr.mxu0 %v381
  %926 = vmatpush1.msra.mxu0 %v380
  %927 = vmatprep.subr.mxu0 %v384
  %928 = vmatpush1.msra.mxu0 %v383
  %929 = vmatprep.subr.mxu0 0.0
  %930 = vmatpush1.msra.mxu0 0.0
  %931 = vmatprep.subr.mxu0 0.0
  %932 = vmatpush1.msra.mxu0 0.0
  %933 = vmatprep.subr.mxu0 0.0
  %934 = vmatpush1.msra.mxu0 0.0
  %935 = vmatprep.subr.mxu0 0.0
  %936 = vmatpush1.msra.mxu0 0.0
  %937 = vmatprep.subr.mxu0 0.0
  %938 = vmatpush1.msra.mxu0 0.0
  %939 = vmatprep.subr.mxu0 0.0
  %940 = vmatpush1.msra.mxu0 0.0
  %941 = vmatprep.subr.mxu0 0.0
  %942 = vmatpush1.msra.mxu0 0.0
  %943 = vmatprep.subr.mxu0 0.0
  %944 = vmatpush1.msra.mxu0 0.0
  %945 = vmatprep.subr.mxu0 0.0
  %946 = vmatpush1.msra.mxu0 0.0
  %947 = vmatprep.subr.mxu0 0.0
  %948 = vmatpush1.msra.mxu0 0.0
  %949 = vmatprep.subr.mxu0 0.0
  %950 = vmatpush1.msra.mxu0 0.0
  %951 = vmatprep.subr.mxu0 0.0
  %952 = vmatpush1.msra.mxu0 0.0
  %953 = vmatprep.subr.mxu0 0.0
  %954 = vmatpush1.msra.mxu0 0.0
  %955 = vmatprep.subr.mxu0 0.0
  %956 = vmatpush1.msra.mxu0 0.0
  %957 = vmatprep.subr.mxu0 0.0
  %958 = vmatpush1.msra.mxu0 0.0
  %959 = vmatprep.subr.mxu0 0.0
  %960 = vmatpush1.msra.mxu0 0.0
  %961 = vmatprep.mubr.f32.mxu0 0.0
  %962 = vmatmul.mubr.f32.gmra.mrb[0].mxu0 %v892
  %v963 = vpop.f32.mrb[0].mxu0
  %v964 = vadd.f32 0.0, %v963
  %v965 = vpop.f32.mrb[0].mxu0
  %v966 = vadd.f32 0.0, %v965
  %967 = vdwg.mxu0
  %968 = vmatprep.subr.mxu0 0.0
  %969 = vmatpush1.msra.mxu0 %v340
  %970 = vmatprep.subr.mxu0 0.0
  %971 = vmatpush1.msra.mxu0 %v343
  %972 = vmatprep.subr.mxu0 0.0
  %973 = vmatpush1.msra.mxu0 %v346
  %974 = vmatprep.subr.mxu0 0.0
  %975 = vmatpush1.msra.mxu0 %v349
  %976 = vmatprep.subr.mxu0 0.0
  %977 = vmatpush1.msra.mxu0 %v352
  %978 = vmatprep.subr.mxu0 0.0
  %979 = vmatpush1.msra.mxu0 %v355
  %980 = vmatprep.subr.mxu0 0.0
  %981 = vmatpush1.msra.mxu0 %v358
  %982 = vmatprep.subr.mxu0 0.0
  %983 = vmatpush1.msra.mxu0 %v361
  %984 = vmatprep.subr.mxu0 0.0
  %985 = vmatpush1.msra.mxu0 %v364
  %986 = vmatprep.subr.mxu0 0.0
  %987 = vmatpush1.msra.mxu0 %v367
  %988 = vmatprep.subr.mxu0 0.0
  %989 = vmatpush1.msra.mxu0 %v370
  %990 = vmatprep.subr.mxu0 0.0
  %991 = vmatpush1.msra.mxu0 %v373
  %992 = vmatprep.subr.mxu0 0.0
  %993 = vmatpush1.msra.mxu0 %v376
  %994 = vmatprep.subr.mxu0 0.0
  %995 = vmatpush1.msra.mxu0 %v379
  %996 = vmatprep.subr.mxu0 0.0
  %997 = vmatpush1.msra.mxu0 %v382
  %998 = vmatprep.subr.mxu0 0.0
  %999 = vmatpush1.msra.mxu0 %v385
  %1000 = vmatprep.subr.mxu0 0.0
  %1001 = vmatpush1.msra.mxu0 0.0
  %1002 = vmatprep.subr.mxu0 0.0
  %1003 = vmatpush1.msra.mxu0 0.0
  %1004 = vmatprep.subr.mxu0 0.0
  %1005 = vmatpush1.msra.mxu0 0.0
  %1006 = vmatprep.subr.mxu0 0.0
  %1007 = vmatpush1.msra.mxu0 0.0
  %1008 = vmatprep.subr.mxu0 0.0
  %1009 = vmatpush1.msra.mxu0 0.0
  %1010 = vmatprep.subr.mxu0 0.0
  %1011 = vmatpush1.msra.mxu0 0.0
  %1012 = vmatprep.subr.mxu0 0.0
  %1013 = vmatpush1.msra.mxu0 0.0
  %1014 = vmatprep.subr.mxu0 0.0
  %1015 = vmatpush1.msra.mxu0 0.0
  %1016 = vmatprep.subr.mxu0 0.0
  %1017 = vmatpush1.msra.mxu0 0.0
  %1018 = vmatprep.subr.mxu0 0.0
  %1019 = vmatpush1.msra.mxu0 0.0
  %1020 = vmatprep.subr.mxu0 0.0
  %1021 = vmatpush1.msra.mxu0 0.0
  %1022 = vmatprep.subr.mxu0 0.0
  %1023 = vmatpush1.msra.mxu0 0.0
  %1024 = vmatprep.subr.mxu0 0.0
  %1025 = vmatpush1.msra.mxu0 0.0
  %1026 = vmatprep.subr.mxu0 0.0
  %1027 = vmatpush1.msra.mxu0 0.0
  %1028 = vmatprep.subr.mxu0 0.0
  %1029 = vmatpush1.msra.mxu0 0.0
  %1030 = vmatprep.subr.mxu0 0.0
  %1031 = vmatpush1.msra.mxu0 0.0
  %1032 = vmatprep.mubr.f32.mxu0 0.0
  %1033 = vmatmul.mubr.f32.gmra.mrb[0].mxu0 %v892
  %v1034 = vpop.f32.mrb[0].mxu0
  %v1035 = vadd.f32 0.0, %v1034
  %v1036 = vpop.f32.mrb[0].mxu0
  %1037 = vdwg.mxu0
  %v1038 = vadd.f32 %v894, %v964
  %v1039 = vxor.u32 %v1038, 2147483648
  %v1040 = vmul.f32 %v1039, 1.442695
  %v1041 = vpow.pop %v1040
  %v1042 = vadd.f32 %v1041, 1.0
  %v1043 = vrcp.pop %v1042
  %v1044 = vmul.f32 1.0, %v1043
  %v1045 = vadd.f32 %v895, %v966
  %v1046 = vxor.u32 %v1045, 2147483648
  %v1047 = vmul.f32 %v1046, 1.442695
  %v1048 = vpow.pop %v1047
  %v1049 = vadd.f32 %v1048, 1.0
  %v1050 = vrcp.pop %v1049
  %v1051 = vmul.f32 1.0, %v1050
  %v1052 = vadd.f32 %v1035, %v549
  %v1053 = vmul.f32 %v1044, %v1052
  %v1054 = vadd.f32 %v896, %v1053
  %v1055 = vtanh.pop %v1054
  %v1056 = vsub.f32 1.0, %v1051
  %v1057 = vmul.f32 %v1056, %v1055
  %v1058 = vmul.f32 %v1051, %v892
  %v1059 = vadd.f32 %v1057, %v1058
  %1060 = vst [vmem:[#allocation3 + $0x18] sm:$0xff] %v1059
  %v1061 = vld [vmem:[#allocation2 + $0x60] sm:$0xff]
  %v1062 = vld [vmem:[#allocation2 + $0x68] sm:$0xff]
  %v1063 = vld [vmem:[#allocation2 + $0x70] sm:$0xff]
  %1064 = vmatprep.subr.mxu0 %v339
  %1065 = vmatpush1.msra.mxu0 %v338
  %1066 = vmatprep.subr.mxu0 %v342
  %1067 = vmatpush1.msra.mxu0 %v341
  %1068 = vmatprep.subr.mxu0 %v345
  %1069 = vmatpush1.msra.mxu0 %v344
  %1070 = vmatprep.subr.mxu0 %v348
  %1071 = vmatpush1.msra.mxu0 %v347
  %1072 = vmatprep.subr.mxu0 %v351
  %1073 = vmatpush1.msra.mxu0 %v350
  %1074 = vmatprep.subr.mxu0 %v354
  %1075 = vmatpush1.msra.mxu0 %v353
  %1076 = vmatprep.subr.mxu0 %v357
  %1077 = vmatpush1.msra.mxu0 %v356
  %1078 = vmatprep.subr.mxu0 %v360
  %1079 = vmatpush1.msra.mxu0 %v359
  %1080 = vmatprep.subr.mxu0 %v363
  %1081 = vmatpush1.msra.mxu0 %v362
  %1082 = vmatprep.subr.mxu0 %v366
  %1083 = vmatpush1.msra.mxu0 %v365
  %1084 = vmatprep.subr.mxu0 %v369
  %1085 = vmatpush1.msra.mxu0 %v368
  %1086 = vmatprep.subr.mxu0 %v372
  %1087 = vmatpush1.msra.mxu0 %v371
  %1088 = vmatprep.subr.mxu0 %v375
  %1089 = vmatpush1.msra.mxu0 %v374
  %1090 = vmatprep.subr.mxu0 %v378
  %1091 = vmatpush1.msra.mxu0 %v377
  %1092 = vmatprep.subr.mxu0 %v381
  %1093 = vmatpush1.msra.mxu0 %v380
  %1094 = vmatprep.subr.mxu0 %v384
  %1095 = vmatpush1.msra.mxu0 %v383
  %1096 = vmatprep.subr.mxu0 0.0
  %1097 = vmatpush1.msra.mxu0 0.0
  %1098 = vmatprep.subr.mxu0 0.0
  %1099 = vmatpush1.msra.mxu0 0.0
  %1100 = vmatprep.subr.mxu0 0.0
  %1101 = vmatpush1.msra.mxu0 0.0
  %1102 = vmatprep.subr.mxu0 0.0
  %1103 = vmatpush1.msra.mxu0 0.0
  %1104 = vmatprep.subr.mxu0 0.0
  %1105 = vmatpush1.msra.mxu0 0.0
  %1106 = vmatprep.subr.mxu0 0.0
  %1107 = vmatpush1.msra.mxu0 0.0
  %1108 = vmatprep.subr.mxu0 0.0
  %1109 = vmatpush1.msra.mxu0 0.0
  %1110 = vmatprep.subr.mxu0 0.0
  %1111 = vmatpush1.msra.mxu0 0.0
  %1112 = vmatprep.subr.mxu0 0.0
  %1113 = vmatpush1.msra.mxu0 0.0
  %1114 = vmatprep.subr.mxu0 0.0
  %1115 = vmatpush1.msra.mxu0 0.0
  %1116 = vmatprep.subr.mxu0 0.0
  %1117 = vmatpush1.msra.mxu0 0.0
  %1118 = vmatprep.subr.mxu0 0.0
  %1119 = vmatpush1.msra.mxu0 0.0
  %1120 = vmatprep.subr.mxu0 0.0
  %1121 = vmatpush1.msra.mxu0 0.0
  %1122 = vmatprep.subr.mxu0 0.0
  %1123 = vmatpush1.msra.mxu0 0.0
  %1124 = vmatprep.subr.mxu0 0.0
  %1125 = vmatpush1.msra.mxu0 0.0
  %1126 = vmatprep.subr.mxu0 0.0
  %1127 = vmatpush1.msra.mxu0 0.0
  %1128 = vmatprep.mubr.f32.mxu0 0.0
  %1129 = vmatmul.mubr.f32.gmra.mrb[0].mxu0 %v1059
  %v1130 = vpop.f32.mrb[0].mxu0
  %v1131 = vadd.f32 0.0, %v1130
  %v1132 = vpop.f32.mrb[0].mxu0
  %v1133 = vadd.f32 0.0, %v1132
  %1134 = vdwg.mxu0
  %1135 = vmatprep.subr.mxu0 0.0
  %1136 = vmatpush1.msra.mxu0 %v340
  %1137 = vmatprep.subr.mxu0 0.0
  %1138 = vmatpush1.msra.mxu0 %v343
  %1139 = vmatprep.subr.mxu0 0.0
  %1140 = vmatpush1.msra.mxu0 %v346
  %1141 = vmatprep.subr.mxu0 0.0
  %1142 = vmatpush1.msra.mxu0 %v349
  %1143 = vmatprep.subr.mxu0 0.0
  %1144 = vmatpush1.msra.mxu0 %v352
  %1145 = vmatprep.subr.mxu0 0.0
  %1146 = vmatpush1.msra.mxu0 %v355
  %1147 = vmatprep.subr.mxu0 0.0
  %1148 = vmatpush1.msra.mxu0 %v358
  %1149 = vmatprep.subr.mxu0 0.0
  %1150 = vmatpush1.msra.mxu0 %v361
  %1151 = vmatprep.subr.mxu0 0.0
  %1152 = vmatpush1.msra.mxu0 %v364
  %1153 = vmatprep.subr.mxu0 0.0
  %1154 = vmatpush1.msra.mxu0 %v367
  %1155 = vmatprep.subr.mxu0 0.0
  %1156 = vmatpush1.msra.mxu0 %v370
  %1157 = vmatprep.subr.mxu0 0.0
  %1158 = vmatpush1.msra.mxu0 %v373
  %1159 = vmatprep.subr.mxu0 0.0
  %1160 = vmatpush1.msra.mxu0 %v376
  %1161 = vmatprep.subr.mxu0 0.0
  %1162 = vmatpush1.msra.mxu0 %v379
  %1163 = vmatprep.subr.mxu0 0.0
  %1164 = vmatpush1.msra.mxu0 %v382
  %1165 = vmatprep.subr.mxu0 0.0
  %1166 = vmatpush1.msra.mxu0 %v385
  %1167 = vmatprep.subr.mxu0 0.0
  %1168 = vmatpush1.msra.mxu0 0.0
  %1169 = vmatprep.subr.mxu0 0.0
  %1170 = vmatpush1.msra.mxu0 0.0
  %1171 = vmatprep.subr.mxu0 0.0
  %1172 = vmatpush1.msra.mxu0 0.0
  %1173 = vmatprep.subr.mxu0 0.0
  %1174 = vmatpush1.msra.mxu0 0.0
  %1175 = vmatprep.subr.mxu0 0.0
  %1176 = vmatpush1.msra.mxu0 0.0
  %1177 = vmatprep.subr.mxu0 0.0
  %1178 = vmatpush1.msra.mxu0 0.0
  %1179 = vmatprep.subr.mxu0 0.0
  %1180 = vmatpush1.msra.mxu0 0.0
  %1181 = vmatprep.subr.mxu0 0.0
  %1182 = vmatpush1.msra.mxu0 0.0
  %1183 = vmatprep.subr.mxu0 0.0
  %1184 = vmatpush1.msra.mxu0 0.0
  %1185 = vmatprep.subr.mxu0 0.0
  %1186 = vmatpush1.msra.mxu0 0.0
  %1187 = vmatprep.subr.mxu0 0.0
  %1188 = vmatpush1.msra.mxu0 0.0
  %1189 = vmatprep.subr.mxu0 0.0
  %1190 = vmatpush1.msra.mxu0 0.0
  %1191 = vmatprep.subr.mxu0 0.0
  %1192 = vmatpush1.msra.mxu0 0.0
  %1193 = vmatprep.subr.mxu0 0.0
  %1194 = vmatpush1.msra.mxu0 0.0
  %1195 = vmatprep.subr.mxu0 0.0
  %1196 = vmatpush1.msra.mxu0 0.0
  %1197 = vmatprep.subr.mxu0 0.0
  %1198 = vmatpush1.msra.mxu0 0.0
  %1199 = vmatprep.mubr.f32.mxu0 0.0
  %1200 = vmatmul.mubr.f32.gmra.mrb[0].mxu0 %v1059
  %v1201 = vpop.f32.mrb[0].mxu0
  %v1202 = vadd.f32 0.0, %v1201
  %v1203 = vpop.f32.mrb[0].mxu0
  %1204 = vdwg.mxu0
  %v1205 = vadd.f32 %v1061, %v1131
  %v1206 = vxor.u32 %v1205, 2147483648
  %v1207 = vmul.f32 %v1206, 1.442695
  %v1208 = vpow.pop %v1207
  %v1209 = vadd.f32 %v1208, 1.0
  %v1210 = vrcp.pop %v1209
  %v1211 = vmul.f32 1.0, %v1210
  %v1212 = vadd.f32 %v1062, %v1133
  %v1213 = vxor.u32 %v1212, 2147483648
  %v1214 = vmul.f32 %v1213, 1.442695
  %v1215 = vpow.pop %v1214
  %v1216 = vadd.f32 %v1215, 1.0
  %v1217 = vrcp.pop %v1216
  %v1218 = vmul.f32 1.0, %v1217
  %v1219 = vadd.f32 %v1202, %v549
  %v1220 = vmul.f32 %v1211, %v1219
  %v1221 = vadd.f32 %v1063, %v1220
  %v1222 = vtanh.pop %v1221
  %v1223 = vsub.f32 1.0, %v1218
  %v1224 = vmul.f32 %v1223, %v1222
  %v1225 = vmul.f32 %v1218, %v1059
  %v1226 = vadd.f32 %v1224, %v1225
  %1227 = vst [vmem:[#allocation3 + $0x20] sm:$0xff] %v1226
  %v1228 = vld [vmem:[#allocation2 + $0x78] sm:$0xff]
  %v1229 = vld [vmem:[#allocation2 + $0x80] sm:$0xff]
  %v1230 = vld [vmem:[#allocation2 + $0x88] sm:$0xff]
  %1231 = vmatprep.subr.mxu0 %v339
  %1232 = vmatpush1.msra.mxu0 %v338
  %1233 = vmatprep.subr.mxu0 %v342
  %1234 = vmatpush1.msra.mxu0 %v341
  %1235 = vmatprep.subr.mxu0 %v345
  %1236 = vmatpush1.msra.mxu0 %v344
  %1237 = vmatprep.subr.mxu0 %v348
  %1238 = vmatpush1.msra.mxu0 %v347
  %1239 = vmatprep.subr.mxu0 %v351
  %1240 = vmatpush1.msra.mxu0 %v350
  %1241 = vmatprep.subr.mxu0 %v354
  %1242 = vmatpush1.msra.mxu0 %v353
  %1243 = vmatprep.subr.mxu0 %v357
  %1244 = vmatpush1.msra.mxu0 %v356
  %1245 = vmatprep.subr.mxu0 %v360
  %1246 = vmatpush1.msra.mxu0 %v359
  %1247 = vmatprep.subr.mxu0 %v363
  %1248 = vmatpush1.msra.mxu0 %v362
  %1249 = vmatprep.subr.mxu0 %v366
  %1250 = vmatpush1.msra.mxu0 %v365
  %1251 = vmatprep.subr.mxu0 %v369
  %1252 = vmatpush1.msra.mxu0 %v368
  %1253 = vmatprep.subr.mxu0 %v372
  %1254 = vmatpush1.msra.mxu0 %v371
  %1255 = vmatprep.subr.mxu0 %v375
  %1256 = vmatpush1.msra.mxu0 %v374
  %1257 = vmatprep.subr.mxu0 %v378
  %1258 = vmatpush1.msra.mxu0 %v377
  %1259 = vmatprep.subr.mxu0 %v381
  %1260 = vmatpush1.msra.mxu0 %v380
  %1261 = vmatprep.subr.mxu0 %v384
  %1262 = vmatpush1.msra.mxu0 %v383
  %1263 = vmatprep.subr.mxu0 0.0
  %1264 = vmatpush1.msra.mxu0 0.0
  %1265 = vmatprep.subr.mxu0 0.0
  %1266 = vmatpush1.msra.mxu0 0.0
  %1267 = vmatprep.subr.mxu0 0.0
  %1268 = vmatpush1.msra.mxu0 0.0
  %1269 = vmatprep.subr.mxu0 0.0
  %1270 = vmatpush1.msra.mxu0 0.0
  %1271 = vmatprep.subr.mxu0 0.0
  %1272 = vmatpush1.msra.mxu0 0.0
  %1273 = vmatprep.subr.mxu0 0.0
  %1274 = vmatpush1.msra.mxu0 0.0
  %1275 = vmatprep.subr.mxu0 0.0
  %1276 = vmatpush1.msra.mxu0 0.0
  %1277 = vmatprep.subr.mxu0 0.0
  %1278 = vmatpush1.msra.mxu0 0.0
  %1279 = vmatprep.subr.mxu0 0.0
  %1280 = vmatpush1.msra.mxu0 0.0
  %1281 = vmatprep.subr.mxu0 0.0
  %1282 = vmatpush1.msra.mxu0 0.0
  %1283 = vmatprep.subr.mxu0 0.0
  %1284 = vmatpush1.msra.mxu0 0.0
  %1285 = vmatprep.subr.mxu0 0.0
  %1286 = vmatpush1.msra.mxu0 0.0
  %1287 = vmatprep.subr.mxu0 0.0
  %1288 = vmatpush1.msra.mxu0 0.0
  %1289 = vmatprep.subr.mxu0 0.0
  %1290 = vmatpush1.msra.mxu0 0.0
  %1291 = vmatprep.subr.mxu0 0.0
  %1292 = vmatpush1.msra.mxu0 0.0
  %1293 = vmatprep.subr.mxu0 0.0
  %1294 = vmatpush1.msra.mxu0 0.0
  %1295 = vmatprep.mubr.f32.mxu0 0.0
  %1296 = vmatmul.mubr.f32.gmra.mrb[0].mxu0 %v1226
  %v1297 = vpop.f32.mrb[0].mxu0
  %v1298 = vadd.f32 0.0, %v1297
  %v1299 = vpop.f32.mrb[0].mxu0
  %v1300 = vadd.f32 0.0, %v1299
  %1301 = vdwg.mxu0
  %1302 = vmatprep.subr.mxu0 0.0
  %1303 = vmatpush1.msra.mxu0 %v340
  %1304 = vmatprep.subr.mxu0 0.0
  %1305 = vmatpush1.msra.mxu0 %v343
  %1306 = vmatprep.subr.mxu0 0.0
  %1307 = vmatpush1.msra.mxu0 %v346
  %1308 = vmatprep.subr.mxu0 0.0
  %1309 = vmatpush1.msra.mxu0 %v349
  %1310 = vmatprep.subr.mxu0 0.0
  %1311 = vmatpush1.msra.mxu0 %v352
  %1312 = vmatprep.subr.mxu0 0.0
  %1313 = vmatpush1.msra.mxu0 %v355
  %1314 = vmatprep.subr.mxu0 0.0
  %1315 = vmatpush1.msra.mxu0 %v358
  %1316 = vmatprep.subr.mxu0 0.0
  %1317 = vmatpush1.msra.mxu0 %v361
  %1318 = vmatprep.subr.mxu0 0.0
  %1319 = vmatpush1.msra.mxu0 %v364
  %1320 = vmatprep.subr.mxu0 0.0
  %1321 = vmatpush1.msra.mxu0 %v367
  %1322 = vmatprep.subr.mxu0 0.0
  %1323 = vmatpush1.msra.mxu0 %v370
  %1324 = vmatprep.subr.mxu0 0.0
  %1325 = vmatpush1.msra.mxu0 %v373
  %1326 = vmatprep.subr.mxu0 0.0
  %1327 = vmatpush1.msra.mxu0 %v376
  %1328 = vmatprep.subr.mxu0 0.0
  %1329 = vmatpush1.msra.mxu0 %v379
  %1330 = vmatprep.subr.mxu0 0.0
  %1331 = vmatpush1.msra.mxu0 %v382
  %1332 = vmatprep.subr.mxu0 0.0
  %1333 = vmatpush1.msra.mxu0 %v385
  %1334 = vmatprep.subr.mxu0 0.0
  %1335 = vmatpush1.msra.mxu0 0.0
  %1336 = vmatprep.subr.mxu0 0.0
  %1337 = vmatpush1.msra.mxu0 0.0
  %1338 = vmatprep.subr.mxu0 0.0
  %1339 = vmatpush1.msra.mxu0 0.0
  %1340 = vmatprep.subr.mxu0 0.0
  %1341 = vmatpush1.msra.mxu0 0.0
  %1342 = vmatprep.subr.mxu0 0.0
  %1343 = vmatpush1.msra.mxu0 0.0
  %1344 = vmatprep.subr.mxu0 0.0
  %1345 = vmatpush1.msra.mxu0 0.0
  %1346 = vmatprep.subr.mxu0 0.0
  %1347 = vmatpush1.msra.mxu0 0.0
  %1348 = vmatprep.subr.mxu0 0.0
  %1349 = vmatpush1.msra.mxu0 0.0
  %1350 = vmatprep.subr.mxu0 0.0
  %1351 = vmatpush1.msra.mxu0 0.0
  %1352 = vmatprep.subr.mxu0 0.0
  %1353 = vmatpush1.msra.mxu0 0.0
  %1354 = vmatprep.subr.mxu0 0.0
  %1355 = vmatpush1.msra.mxu0 0.0
  %1356 = vmatprep.subr.mxu0 0.0
  %1357 = vmatpush1.msra.mxu0 0.0
  %1358 = vmatprep.subr.mxu0 0.0
  %1359 = vmatpush1.msra.mxu0 0.0
  %1360 = vmatprep.subr.mxu0 0.0
  %1361 = vmatpush1.msra.mxu0 0.0
  %1362 = vmatprep.subr.mxu0 0.0
  %1363 = vmatpush1.msra.mxu0 0.0
  %1364 = vmatprep.subr.mxu0 0.0
  %1365 = vmatpush1.msra.mxu0 0.0
  %1366 = vmatprep.mubr.f32.mxu0 0.0
  %1367 = vmatmul.mubr.f32.gmra.mrb[0].mxu0 %v1226
  %v1368 = vpop.f32.mrb[0].mxu0
  %v1369 = vadd.f32 0.0, %v1368
  %v1370 = vpop.f32.mrb[0].mxu0
  %1371 = vdwg.mxu0
  %v1372 = vadd.f32 %v1228, %v1298
  %v1373 = vxor.u32 %v1372, 2147483648
  %v1374 = vmul.f32 %v1373, 1.442695
  %v1375 = vpow.pop %v1374
  %v1376 = vadd.f32 %v1375, 1.0
  %v1377 = vrcp.pop %v1376
  %v1378 = vmul.f32 1.0, %v1377
  %v1379 = vadd.f32 %v1229, %v1300
  %v1380 = vxor.u32 %v1379, 2147483648
  %v1381 = vmul.f32 %v1380, 1.442695
  %v1382 = vpow.pop %v1381
  %v1383 = vadd.f32 %v1382, 1.0
  %v1384 = vrcp.pop %v1383
  %v1385 = vmul.f32 1.0, %v1384
  %v1386 = vadd.f32 %v1369, %v549
  %v1387 = vmul.f32 %v1378, %v1386
  %v1388 = vadd.f32 %v1230, %v1387
  %v1389 = vtanh.pop %v1388
  %v1390 = vsub.f32 1.0, %v1385
  %v1391 = vmul.f32 %v1390, %v1389
  %v1392 = vmul.f32 %v1385, %v1226
  %v1393 = vadd.f32 %v1391, %v1392
  %1394 = vst [vmem:[#allocation3 + $0x28] sm:$0xff] %v1393
  %v1395 = vld [vmem:[#allocation2 + $0x90] sm:$0xff]
  %v1396 = vld [vmem:[#allocation2 + $0x98] sm:$0xff]
  %v1397 = vld [vmem:[#allocation2 + $0xa0] sm:$0xff]
  %1398 = vmatprep.subr.mxu0 %v339
  %1399 = vmatpush1.msra.mxu0 %v338
  %1400 = vmatprep.subr.mxu0 %v342
  %1401 = vmatpush1.msra.mxu0 %v341
  %1402 = vmatprep.subr.mxu0 %v345
  %1403 = vmatpush1.msra.mxu0 %v344
  %1404 = vmatprep.subr.mxu0 %v348
  %1405 = vmatpush1.msra.mxu0 %v347
  %1406 = vmatprep.subr.mxu0 %v351
  %1407 = vmatpush1.msra.mxu0 %v350
  %1408 = vmatprep.subr.mxu0 %v354
  %1409 = vmatpush1.msra.mxu0 %v353
  %1410 = vmatprep.subr.mxu0 %v357
  %1411 = vmatpush1.msra.mxu0 %v356
  %1412 = vmatprep.subr.mxu0 %v360
  %1413 = vmatpush1.msra.mxu0 %v359
  %1414 = vmatprep.subr.mxu0 %v363
  %1415 = vmatpush1.msra.mxu0 %v362
  %1416 = vmatprep.subr.mxu0 %v366
  %1417 = vmatpush1.msra.mxu0 %v365
  %1418 = vmatprep.subr.mxu0 %v369
  %1419 = vmatpush1.msra.mxu0 %v368
  %1420 = vmatprep.subr.mxu0 %v372
  %1421 = vmatpush1.msra.mxu0 %v371
  %1422 = vmatprep.subr.mxu0 %v375
  %1423 = vmatpush1.msra.mxu0 %v374
  %1424 = vmatprep.subr.mxu0 %v378
  %1425 = vmatpush1.msra.mxu0 %v377
  %1426 = vmatprep.subr.mxu0 %v381
  %1427 = vmatpush1.msra.mxu0 %v380
  %1428 = vmatprep.subr.mxu0 %v384
  %1429 = vmatpush1.msra.mxu0 %v383
  %1430 = vmatprep.subr.mxu0 0.0
  %1431 = vmatpush1.msra.mxu0 0.0
  %1432 = vmatprep.subr.mxu0 0.0
  %1433 = vmatpush1.msra.mxu0 0.0
  %1434 = vmatprep.subr.mxu0 0.0
  %1435 = vmatpush1.msra.mxu0 0.0
  %1436 = vmatprep.subr.mxu0 0.0
  %1437 = vmatpush1.msra.mxu0 0.0
  %1438 = vmatprep.subr.mxu0 0.0
  %1439 = vmatpush1.msra.mxu0 0.0
  %1440 = vmatprep.subr.mxu0 0.0
  %1441 = vmatpush1.msra.mxu0 0.0
  %1442 = vmatprep.subr.mxu0 0.0
  %1443 = vmatpush1.msra.mxu0 0.0
  %1444 = vmatprep.subr.mxu0 0.0
  %1445 = vmatpush1.msra.mxu0 0.0
  %1446 = vmatprep.subr.mxu0 0.0
  %1447 = vmatpush1.msra.mxu0 0.0
  %1448 = vmatprep.subr.mxu0 0.0
  %1449 = vmatpush1.msra.mxu0 0.0
  %1450 = vmatprep.subr.mxu0 0.0
  %1451 = vmatpush1.msra.mxu0 0.0
  %1452 = vmatprep.subr.mxu0 0.0
  %1453 = vmatpush1.msra.mxu0 0.0
  %1454 = vmatprep.subr.mxu0 0.0
  %1455 = vmatpush1.msra.mxu0 0.0
  %1456 = vmatprep.subr.mxu0 0.0
  %1457 = vmatpush1.msra.mxu0 0.0
  %1458 = vmatprep.subr.mxu0 0.0
  %1459 = vmatpush1.msra.mxu0 0.0
  %1460 = vmatprep.subr.mxu0 0.0
  %1461 = vmatpush1.msra.mxu0 0.0
  %1462 = vmatprep.mubr.f32.mxu0 0.0
  %1463 = vmatmul.mubr.f32.gmra.mrb[0].mxu0 %v1393
  %v1464 = vpop.f32.mrb[0].mxu0
  %v1465 = vadd.f32 0.0, %v1464
  %v1466 = vpop.f32.mrb[0].mxu0
  %v1467 = vadd.f32 0.0, %v1466
  %1468 = vdwg.mxu0
  %1469 = vmatprep.subr.mxu0 0.0
  %1470 = vmatpush1.msra.mxu0 %v340
  %1471 = vmatprep.subr.mxu0 0.0
  %1472 = vmatpush1.msra.mxu0 %v343
  %1473 = vmatprep.subr.mxu0 0.0
  %1474 = vmatpush1.msra.mxu0 %v346
  %1475 = vmatprep.subr.mxu0 0.0
  %1476 = vmatpush1.msra.mxu0 %v349
  %1477 = vmatprep.subr.mxu0 0.0
  %1478 = vmatpush1.msra.mxu0 %v352
  %1479 = vmatprep.subr.mxu0 0.0
  %1480 = vmatpush1.msra.mxu0 %v355
  %1481 = vmatprep.subr.mxu0 0.0
  %1482 = vmatpush1.msra.mxu0 %v358
  %1483 = vmatprep.subr.mxu0 0.0
  %1484 = vmatpush1.msra.mxu0 %v361
  %1485 = vmatprep.subr.mxu0 0.0
  %1486 = vmatpush1.msra.mxu0 %v364
  %1487 = vmatprep.subr.mxu0 0.0
  %1488 = vmatpush1.msra.mxu0 %v367
  %1489 = vmatprep.subr.mxu0 0.0
  %1490 = vmatpush1.msra.mxu0 %v370
  %1491 = vmatprep.subr.mxu0 0.0
  %1492 = vmatpush1.msra.mxu0 %v373
  %1493 = vmatprep.subr.mxu0 0.0
  %1494 = vmatpush1.msra.mxu0 %v376
  %1495 = vmatprep.subr.mxu0 0.0
  %1496 = vmatpush1.msra.mxu0 %v379
  %1497 = vmatprep.subr.mxu0 0.0
  %1498 = vmatpush1.msra.mxu0 %v382
  %1499 = vmatprep.subr.mxu0 0.0
  %1500 = vmatpush1.msra.mxu0 %v385
  %1501 = vmatprep.subr.mxu0 0.0
  %1502 = vmatpush1.msra.mxu0 0.0
  %1503 = vmatprep.subr.mxu0 0.0
  %1504 = vmatpush1.msra.mxu0 0.0
  %1505 = vmatprep.subr.mxu0 0.0
  %1506 = vmatpush1.msra.mxu0 0.0
  %1507 = vmatprep.subr.mxu0 0.0
  %1508 = vmatpush1.msra.mxu0 0.0
  %1509 = vmatprep.subr.mxu0 0.0
  %1510 = vmatpush1.msra.mxu0 0.0
  %1511 = vmatprep.subr.mxu0 0.0
  %1512 = vmatpush1.msra.mxu0 0.0
  %1513 = vmatprep.subr.mxu0 0.0
  %1514 = vmatpush1.msra.mxu0 0.0
  %1515 = vmatprep.subr.mxu0 0.0
  %1516 = vmatpush1.msra.mxu0 0.0
  %1517 = vmatprep.subr.mxu0 0.0
  %1518 = vmatpush1.msra.mxu0 0.0
  %1519 = vmatprep.subr.mxu0 0.0
  %1520 = vmatpush1.msra.mxu0 0.0
  %1521 = vmatprep.subr.mxu0 0.0
  %1522 = vmatpush1.msra.mxu0 0.0
  %1523 = vmatprep.subr.mxu0 0.0
  %1524 = vmatpush1.msra.mxu0 0.0
  %1525 = vmatprep.subr.mxu0 0.0
  %1526 = vmatpush1.msra.mxu0 0.0
  %1527 = vmatprep.subr.mxu0 0.0
  %1528 = vmatpush1.msra.mxu0 0.0
  %1529 = vmatprep.subr.mxu0 0.0
  %1530 = vmatpush1.msra.mxu0 0.0
  %1531 = vmatprep.subr.mxu0 0.0
  %1532 = vmatpush1.msra.mxu0 0.0
  %1533 = vmatprep.mubr.f32.mxu0 0.0
  %1534 = vmatmul.mubr.f32.gmra.mrb[0].mxu0 %v1393
  %v1535 = vpop.f32.mrb[0].mxu0
  %v1536 = vadd.f32 0.0, %v1535
  %v1537 = vpop.f32.mrb[0].mxu0
  %1538 = vdwg.mxu0
  %v1539 = vadd.f32 %v1395, %v1465
  %v1540 = vxor.u32 %v1539, 2147483648
  %v1541 = vmul.f32 %v1540, 1.442695
  %v1542 = vpow.pop %v1541
  %v1543 = vadd.f32 %v1542, 1.0
  %v1544 = vrcp.pop %v1543
  %v1545 = vmul.f32 1.0, %v1544
  %v1546 = vadd.f32 %v1396, %v1467
  %v1547 = vxor.u32 %v1546, 2147483648
  %v1548 = vmul.f32 %v1547, 1.442695
  %v1549 = vpow.pop %v1548
  %v1550 = vadd.f32 %v1549, 1.0
  %v1551 = vrcp.pop %v1550
  %v1552 = vmul.f32 1.0, %v1551
  %v1553 = vadd.f32 %v1536, %v549
  %v1554 = vmul.f32 %v1545, %v1553
  %v1555 = vadd.f32 %v1397, %v1554
  %v1556 = vtanh.pop %v1555
  %v1557 = vsub.f32 1.0, %v1552
  %v1558 = vmul.f32 %v1557, %v1556
  %v1559 = vmul.f32 %v1552, %v1393
  %v1560 = vadd.f32 %v1558, %v1559
  %1561 = vst [vmem:[#allocation3 + $0x30] sm:$0xff] %v1560
  %v1562 = vld [vmem:[#allocation2 + $0xa8] sm:$0xff]
  %v1563 = vld [vmem:[#allocation2 + $0xb0] sm:$0xff]
  %v1564 = vld [vmem:[#allocation2 + $0xb8] sm:$0xff]
  %1565 = vmatprep.subr.mxu0 %v339
  %1566 = vmatpush1.msra.mxu0 %v338
  %1567 = vmatprep.subr.mxu0 %v342
  %1568 = vmatpush1.msra.mxu0 %v341
  %1569 = vmatprep.subr.mxu0 %v345
  %1570 = vmatpush1.msra.mxu0 %v344
  %1571 = vmatprep.subr.mxu0 %v348
  %1572 = vmatpush1.msra.mxu0 %v347
  %1573 = vmatprep.subr.mxu0 %v351
  %1574 = vmatpush1.msra.mxu0 %v350
  %1575 = vmatprep.subr.mxu0 %v354
  %1576 = vmatpush1.msra.mxu0 %v353
  %1577 = vmatprep.subr.mxu0 %v357
  %1578 = vmatpush1.msra.mxu0 %v356
  %1579 = vmatprep.subr.mxu0 %v360
  %1580 = vmatpush1.msra.mxu0 %v359
  %1581 = vmatprep.subr.mxu0 %v363
  %1582 = vmatpush1.msra.mxu0 %v362
  %1583 = vmatprep.subr.mxu0 %v366
  %1584 = vmatpush1.msra.mxu0 %v365
  %1585 = vmatprep.subr.mxu0 %v369
  %1586 = vmatpush1.msra.mxu0 %v368
  %1587 = vmatprep.subr.mxu0 %v372
  %1588 = vmatpush1.msra.mxu0 %v371
  %1589 = vmatprep.subr.mxu0 %v375
  %1590 = vmatpush1.msra.mxu0 %v374
  %1591 = vmatprep.subr.mxu0 %v378
  %1592 = vmatpush1.msra.mxu0 %v377
  %1593 = vmatprep.subr.mxu0 %v381
  %1594 = vmatpush1.msra.mxu0 %v380
  %1595 = vmatprep.subr.mxu0 %v384
  %1596 = vmatpush1.msra.mxu0 %v383
  %1597 = vmatprep.subr.mxu0 0.0
  %1598 = vmatpush1.msra.mxu0 0.0
  %1599 = vmatprep.subr.mxu0 0.0
  %1600 = vmatpush1.msra.mxu0 0.0
  %1601 = vmatprep.subr.mxu0 0.0
  %1602 = vmatpush1.msra.mxu0 0.0
  %1603 = vmatprep.subr.mxu0 0.0
  %1604 = vmatpush1.msra.mxu0 0.0
  %1605 = vmatprep.subr.mxu0 0.0
  %1606 = vmatpush1.msra.mxu0 0.0
  %1607 = vmatprep.subr.mxu0 0.0
  %1608 = vmatpush1.msra.mxu0 0.0
  %1609 = vmatprep.subr.mxu0 0.0
  %1610 = vmatpush1.msra.mxu0 0.0
  %1611 = vmatprep.subr.mxu0 0.0
  %1612 = vmatpush1.msra.mxu0 0.0
  %1613 = vmatprep.subr.mxu0 0.0
  %1614 = vmatpush1.msra.mxu0 0.0
  %1615 = vmatprep.subr.mxu0 0.0
  %1616 = vmatpush1.msra.mxu0 0.0
  %1617 = vmatprep.subr.mxu0 0.0
  %1618 = vmatpush1.msra.mxu0 0.0
  %1619 = vmatprep.subr.mxu0 0.0
  %1620 = vmatpush1.msra.mxu0 0.0
  %1621 = vmatprep.subr.mxu0 0.0
  %1622 = vmatpush1.msra.mxu0 0.0
  %1623 = vmatprep.subr.mxu0 0.0
  %1624 = vmatpush1.msra.mxu0 0.0
  %1625 = vmatprep.subr.mxu0 0.0
  %1626 = vmatpush1.msra.mxu0 0.0
  %1627 = vmatprep.subr.mxu0 0.0
  %1628 = vmatpush1.msra.mxu0 0.0
  %1629 = vmatprep.mubr.f32.mxu0 0.0
  %1630 = vmatmul.mubr.f32.gmra.mrb[0].mxu0 %v1560
  %v1631 = vpop.f32.mrb[0].mxu0
  %v1632 = vadd.f32 0.0, %v1631
  %v1633 = vpop.f32.mrb[0].mxu0
  %v1634 = vadd.f32 0.0, %v1633
  %1635 = vdwg.mxu0
  %1636 = vmatprep.subr.mxu0 0.0
  %1637 = vmatpush1.msra.mxu0 %v340
  %1638 = vmatprep.subr.mxu0 0.0
  %1639 = vmatpush1.msra.mxu0 %v343
  %1640 = vmatprep.subr.mxu0 0.0
  %1641 = vmatpush1.msra.mxu0 %v346
  %1642 = vmatprep.subr.mxu0 0.0
  %1643 = vmatpush1.msra.mxu0 %v349
  %1644 = vmatprep.subr.mxu0 0.0
  %1645 = vmatpush1.msra.mxu0 %v352
  %1646 = vmatprep.subr.mxu0 0.0
  %1647 = vmatpush1.msra.mxu0 %v355
  %1648 = vmatprep.subr.mxu0 0.0
  %1649 = vmatpush1.msra.mxu0 %v358
  %1650 = vmatprep.subr.mxu0 0.0
  %1651 = vmatpush1.msra.mxu0 %v361
  %1652 = vmatprep.subr.mxu0 0.0
  %1653 = vmatpush1.msra.mxu0 %v364
  %1654 = vmatprep.subr.mxu0 0.0
  %1655 = vmatpush1.msra.mxu0 %v367
  %1656 = vmatprep.subr.mxu0 0.0
  %1657 = vmatpush1.msra.mxu0 %v370
  %1658 = vmatprep.subr.mxu0 0.0
  %1659 = vmatpush1.msra.mxu0 %v373
  %1660 = vmatprep.subr.mxu0 0.0
  %1661 = vmatpush1.msra.mxu0 %v376
  %1662 = vmatprep.subr.mxu0 0.0
  %1663 = vmatpush1.msra.mxu0 %v379
  %1664 = vmatprep.subr.mxu0 0.0
  %1665 = vmatpush1.msra.mxu0 %v382
  %1666 = vmatprep.subr.mxu0 0.0
  %1667 = vmatpush1.msra.mxu0 %v385
  %1668 = vmatprep.subr.mxu0 0.0
  %1669 = vmatpush1.msra.mxu0 0.0
  %1670 = vmatprep.subr.mxu0 0.0
  %1671 = vmatpush1.msra.mxu0 0.0
  %1672 = vmatprep.subr.mxu0 0.0
  %1673 = vmatpush1.msra.mxu0 0.0
  %1674 = vmatprep.subr.mxu0 0.0
  %1675 = vmatpush1.msra.mxu0 0.0
  %1676 = vmatprep.subr.mxu0 0.0
  %1677 = vmatpush1.msra.mxu0 0.0
  %1678 = vmatprep.subr.mxu0 0.0
  %1679 = vmatpush1.msra.mxu0 0.0
  %1680 = vmatprep.subr.mxu0 0.0
  %1681 = vmatpush1.msra.mxu0 0.0
  %1682 = vmatprep.subr.mxu0 0.0
  %1683 = vmatpush1.msra.mxu0 0.0
  %1684 = vmatprep.subr.mxu0 0.0
  %1685 = vmatpush1.msra.mxu0 0.0
  %1686 = vmatprep.subr.mxu0 0.0
  %1687 = vmatpush1.msra.mxu0 0.0
  %1688 = vmatprep.subr.mxu0 0.0
  %1689 = vmatpush1.msra.mxu0 0.0
  %1690 = vmatprep.subr.mxu0 0.0
  %1691 = vmatpush1.msra.mxu0 0.0
  %1692 = vmatprep.subr.mxu0 0.0
  %1693 = vmatpush1.msra.mxu0 0.0
  %1694 = vmatprep.subr.mxu0 0.0
  %1695 = vmatpush1.msra.mxu0 0.0
  %1696 = vmatprep.subr.mxu0 0.0
  %1697 = vmatpush1.msra.mxu0 0.0
  %1698 = vmatprep.subr.mxu0 0.0
  %1699 = vmatpush1.msra.mxu0 0.0
  %1700 = vmatprep.mubr.f32.mxu0 0.0
  %1701 = vmatmul.mubr.f32.gmra.mrb[0].mxu0 %v1560
  %v1702 = vpop.f32.mrb[0].mxu0
  %v1703 = vadd.f32 0.0, %v1702
  %v1704 = vpop.f32.mrb[0].mxu0
  %1705 = vdwg.mxu0
  %v1706 = vadd.f32 %v1562, %v1632
  %v1707 = vxor.u32 %v1706, 2147483648
  %v1708 = vmul.f32 %v1707, 1.442695
  %v1709 = vpow.pop %v1708
  %v1710 = vadd.f32 %v1709, 1.0
  %v1711 = vrcp.pop %v1710
  %v1712 = vmul.f32 1.0, %v1711
  %v1713 = vadd.f32 %v1563, %v1634
  %v1714 = vxor.u32 %v1713, 2147483648
  %v1715 = vmul.f32 %v1714, 1.442695
  %v1716 = vpow.pop %v1715
  %v1717 = vadd.f32 %v1716, 1.0
  %v1718 = vrcp.pop %v1717
  %v1719 = vmul.f32 1.0, %v1718
  %v1720 = vadd.f32 %v1703, %v549
  %v1721 = vmul.f32 %v1712, %v1720
  %v1722 = vadd.f32 %v1564, %v1721
  %v1723 = vtanh.pop %v1722
  %v1724 = vsub.f32 1.0, %v1719
  %v1725 = vmul.f32 %v1724, %v1723
  %v1726 = vmul.f32 %v1719, %v1560
  %v1727 = vadd.f32 %v1725, %v1726
  %1728 = vst [vmem:[#allocation3 + $0x38] sm:$0xff] %v1727
  %v1729 = vld [vmem:[#allocation3] sm:$0xff]
  %v1730 = vld [vmem:[#allocation3 + $0x8] sm:$0xff]
  %v1731 = vld [vmem:[#allocation3 + $0x10] sm:$0xff]
  %v1732 = vld [vmem:[#allocation3 + $0x18] sm:$0xff]
  %v1733 = vld [vmem:[#allocation3 + $0x20] sm:$0xff]
  %v1734 = vld [vmem:[#allocation3 + $0x28] sm:$0xff]
  %v1735 = vld [vmem:[#allocation3 + $0x30] sm:$0xff]
  %v1736 = vld [vmem:[#allocation3 + $0x38] sm:$0xff]
  %v1737 = vtanh.pop %v1729
  %v1738 = vtanh.pop %v1730
  %v1739 = vtanh.pop %v1731
  %v1740 = vtanh.pop %v1732
  %v1741 = vtanh.pop %v1733
  %v1742 = vtanh.pop %v1734
  %v1743 = vtanh.pop %v1735
  %v1744 = vtanh.pop %v1736
  %v1745 = vld [vmem:[%s5] sm:$0xff]
  %v1746 = vld [vmem:[%s5 + $0x8] sm:$0xff]
  %v1747 = vld [vmem:[%s5 + $0x10] sm:$0xff]
  %v1748 = vld [vmem:[%s5 + $0x18] sm:$0xff]
  %v1749 = vld [vmem:[%s5 + $0x20] sm:$0xff]
  %v1750 = vld [vmem:[%s5 + $0x28] sm:$0xff]
  %v1751 = vld [vmem:[%s5 + $0x30] sm:$0xff]
  %v1752 = vld [vmem:[%s5 + $0x38] sm:$0xff]
  %v1753 = vld [vmem:[%s5 + $0x40] sm:$0xff]
  %v1754 = vld [vmem:[%s5 + $0x48] sm:$0xff]
  %v1755 = vld [vmem:[%s5 + $0x50] sm:$0xff]
  %v1756 = vld [vmem:[%s5 + $0x58] sm:$0xff]
  %v1757 = vld [vmem:[%s5 + $0x60] sm:$0xff]
  %v1758 = vld [vmem:[%s5 + $0x68] sm:$0xff]
  %v1759 = vld [vmem:[%s5 + $0x70] sm:$0xff]
  %v1760 = vld [vmem:[%s5 + $0x78] sm:$0xff]
  %v1761 = vld [vmem:[%s5 + $0x80] sm:$0xff]
  %v1762 = vld [vmem:[%s5 + $0x88] sm:$0xff]
  %v1763 = vld [vmem:[%s5 + $0x90] sm:$0xff]
  %v1764 = vld [vmem:[%s5 + $0x98] sm:$0xff]
  %v1765 = vld [vmem:[%s5 + $0xa0] sm:$0xff]
  %v1766 = vld [vmem:[%s5 + $0xa8] sm:$0xff]
  %v1767 = vld [vmem:[%s5 + $0xb0] sm:$0xff]
  %v1768 = vld [vmem:[%s5 + $0xb8] sm:$0xff]
  %v1769 = vld [vmem:[%s5 + $0xc0] sm:$0xff]
  %v1770 = vld [vmem:[%s5 + $0xc8] sm:$0xff]
  %v1771 = vld [vmem:[%s5 + $0xd0] sm:$0xff]
  %v1772 = vld [vmem:[%s5 + $0xd8] sm:$0xff]
  %v1773 = vld [vmem:[%s5 + $0xe0] sm:$0xff]
  %v1774 = vld [vmem:[%s5 + $0xe8] sm:$0xff]
  %v1775 = vld [vmem:[%s5 + $0xf0] sm:$0xff]
  %v1776 = vld [vmem:[%s5 + $0xf8] sm:$0xff]
  %v1777 = vld [vmem:[%s5 + $0x100] sm:$0xff]
  %v1778 = vld [vmem:[%s5 + $0x108] sm:$0xff]
  %v1779 = vld [vmem:[%s5 + $0x110] sm:$0xff]
  %v1780 = vld [vmem:[%s5 + $0x118] sm:$0xff]
  %v1781 = vld [vmem:[%s5 + $0x120] sm:$0xff]
  %v1782 = vld [vmem:[%s5 + $0x128] sm:$0xff]
  %v1783 = vld [vmem:[%s5 + $0x130] sm:$0xff]
  %v1784 = vld [vmem:[%s5 + $0x138] sm:$0xff]
  %v1785 = vld [vmem:[%s5 + $0x140] sm:$0xff]
  %v1786 = vld [vmem:[%s5 + $0x148] sm:$0xff]
  %v1787 = vld [vmem:[%s5 + $0x150] sm:$0xff]
  %v1788 = vld [vmem:[%s5 + $0x158] sm:$0xff]
  %v1789 = vld [vmem:[%s5 + $0x160] sm:$0xff]
  %v1790 = vld [vmem:[%s5 + $0x168] sm:$0xff]
  %v1791 = vld [vmem:[%s5 + $0x170] sm:$0xff]
  %v1792 = vld [vmem:[%s5 + $0x178] sm:$0xff]
  %v1793 = vld [vmem:[%s5 + $0x180] sm:$0xff]
  %v1794 = vld [vmem:[%s5 + $0x188] sm:$0xff]
  %v1795 = vld [vmem:[%s5 + $0x190] sm:$0xff]
  %v1796 = vld [vmem:[%s5 + $0x198] sm:$0xff]
  %v1797 = vld [vmem:[%s5 + $0x1a0] sm:$0xff]
  %v1798 = vld [vmem:[%s5 + $0x1a8] sm:$0xff]
  %v1799 = vld [vmem:[%s5 + $0x1b0] sm:$0xff]
  %v1800 = vld [vmem:[%s5 + $0x1b8] sm:$0xff]
  %v1801 = vld [vmem:[%s5 + $0x1c0] sm:$0xff]
  %v1802 = vld [vmem:[%s5 + $0x1c8] sm:$0xff]
  %v1803 = vld [vmem:[%s5 + $0x1d0] sm:$0xff]
  %v1804 = vld [vmem:[%s5 + $0x1d8] sm:$0xff]
  %v1805 = vld [vmem:[%s5 + $0x1e0] sm:$0xff]
  %v1806 = vld [vmem:[%s5 + $0x1e8] sm:$0xff]
  %v1807 = vld [vmem:[%s5 + $0x1f0] sm:$0xff]
  %v1808 = vld [vmem:[%s5 + $0x1f8] sm:$0xff]
  %v1809 = vld [vmem:[%s6] sm:$0xf]
  %v1811 = vlaneseq
  %v1812 = vshrl.u32 %v1811, 7
  %v1813 = vsub.s32 0, %v1812
  %v1814 = vrot.slane %v1809, %v1813
  %v1815 = vlaneseq
  %v1816 = vshrl.u32 %v1815, 7
  %v1817 = vsub.s32 1, %v1816
  %v1818 = vrot.slane %v1809, %v1817
  %v1819 = vlaneseq
  %v1820 = vshrl.u32 %v1819, 7
  %v1821 = vsub.s32 2, %v1820
  %v1822 = vrot.slane %v1809, %v1821
  %v1823 = vlaneseq
  %v1824 = vshrl.u32 %v1823, 7
  %v1825 = vsub.s32 3, %v1824
  %v1826 = vrot.slane %v1809, %v1825
  %1831 = vmatprep.subr.mxu0 %v1746
  %1832 = vmatpush1.msra.mxu0 %v1745
  %1833 = vmatprep.subr.mxu0 %v1750
  %1834 = vmatpush1.msra.mxu0 %v1749
  %1835 = vmatprep.subr.mxu0 %v1754
  %1836 = vmatpush1.msra.mxu0 %v1753
  %1837 = vmatprep.subr.mxu0 %v1758
  %1838 = vmatpush1.msra.mxu0 %v1757
  %1839 = vmatprep.subr.mxu0 %v1762
  %1840 = vmatpush1.msra.mxu0 %v1761
  %1841 = vmatprep.subr.mxu0 %v1766
  %1842 = vmatpush1.msra.mxu0 %v1765
  %1843 = vmatprep.subr.mxu0 %v1770
  %1844 = vmatpush1.msra.mxu0 %v1769
  %1845 = vmatprep.subr.mxu0 %v1774
  %1846 = vmatpush1.msra.mxu0 %v1773
  %1847 = vmatprep.subr.mxu0 %v1778
  %1848 = vmatpush1.msra.mxu0 %v1777
  %1849 = vmatprep.subr.mxu0 %v1782
  %1850 = vmatpush1.msra.mxu0 %v1781
  %1851 = vmatprep.subr.mxu0 %v1786
  %1852 = vmatpush1.msra.mxu0 %v1785
  %1853 = vmatprep.subr.mxu0 %v1790
  %1854 = vmatpush1.msra.mxu0 %v1789
  %1855 = vmatprep.subr.mxu0 %v1794
  %1856 = vmatpush1.msra.mxu0 %v1793
  %1857 = vmatprep.subr.mxu0 %v1798
  %1858 = vmatpush1.msra.mxu0 %v1797
  %1859 = vmatprep.subr.mxu0 %v1802
  %1860 = vmatpush1.msra.mxu0 %v1801
  %1861 = vmatprep.subr.mxu0 %v1806
  %1862 = vmatpush1.msra.mxu0 %v1805
  %1863 = vmatprep.subr.mxu0 0.0
  %1864 = vmatpush1.msra.mxu0 0.0
  %1865 = vmatprep.subr.mxu0 0.0
  %1866 = vmatpush1.msra.mxu0 0.0
  %1867 = vmatprep.subr.mxu0 0.0
  %1868 = vmatpush1.msra.mxu0 0.0
  %1869 = vmatprep.subr.mxu0 0.0
  %1870 = vmatpush1.msra.mxu0 0.0
  %1871 = vmatprep.subr.mxu0 0.0
  %1872 = vmatpush1.msra.mxu0 0.0
  %1873 = vmatprep.subr.mxu0 0.0
  %1874 = vmatpush1.msra.mxu0 0.0
  %1875 = vmatprep.subr.mxu0 0.0
  %1876 = vmatpush1.msra.mxu0 0.0
  %1877 = vmatprep.subr.mxu0 0.0
  %1878 = vmatpush1.msra.mxu0 0.0
  %1879 = vmatprep.subr.mxu0 0.0
  %1880 = vmatpush1.msra.mxu0 0.0
  %1881 = vmatprep.subr.mxu0 0.0
  %1882 = vmatpush1.msra.mxu0 0.0
  %1883 = vmatprep.subr.mxu0 0.0
  %1884 = vmatpush1.msra.mxu0 0.0
  %1885 = vmatprep.subr.mxu0 0.0
  %1886 = vmatpush1.msra.mxu0 0.0
  %1887 = vmatprep.subr.mxu0 0.0
  %1888 = vmatpush1.msra.mxu0 0.0
  %1889 = vmatprep.subr.mxu0 0.0
  %1890 = vmatpush1.msra.mxu0 0.0
  %1891 = vmatprep.subr.mxu0 0.0
  %1892 = vmatpush1.msra.mxu0 0.0
  %1893 = vmatprep.subr.mxu0 0.0
  %1894 = vmatpush1.msra.mxu0 0.0
  %1895 = vmatprep.mubr.f32.mxu0 0.0
  %1896 = vmatmul.mubr.f32.gmra.mrb[0].mxu0 %v1737
  %v1897 = vpop.f32.mrb[0].mxu0
  %v1898 = vadd.f32 %v1814, %v1897
  %v1899 = vpop.f32.mrb[0].mxu0
  %v1900 = vadd.f32 %v1818, %v1899
  %1901 = vmatprep.mubr.f32.mxu0 0.0
  %1902 = vmatmul.mubr.f32.gmra.mrb[0].mxu0 %v1738
  %v1903 = vpop.f32.mrb[0].mxu0
  %v1904 = vadd.f32 %v1814, %v1903
  %v1905 = vpop.f32.mrb[0].mxu0
  %v1906 = vadd.f32 %v1818, %v1905
  %1907 = vmatprep.mubr.f32.mxu0 0.0
  %1908 = vmatmul.mubr.f32.gmra.mrb[0].mxu0 %v1739
  %v1909 = vpop.f32.mrb[0].mxu0
  %v1910 = vadd.f32 %v1814, %v1909
  %v1911 = vpop.f32.mrb[0].mxu0
  %v1912 = vadd.f32 %v1818, %v1911
  %1913 = vmatprep.mubr.f32.mxu0 0.0
  %1914 = vmatmul.mubr.f32.gmra.mrb[0].mxu0 %v1740
  %v1915 = vpop.f32.mrb[0].mxu0
  %v1916 = vadd.f32 %v1814, %v1915
  %v1917 = vpop.f32.mrb[0].mxu0
  %v1918 = vadd.f32 %v1818, %v1917
  %1919 = vmatprep.mubr.f32.mxu0 0.0
  %1920 = vmatmul.mubr.f32.gmra.mrb[0].mxu0 %v1741
  %v1921 = vpop.f32.mrb[0].mxu0
  %v1922 = vadd.f32 %v1814, %v1921
  %v1923 = vpop.f32.mrb[0].mxu0
  %v1924 = vadd.f32 %v1818, %v1923
  %1925 = vmatprep.mubr.f32.mxu0 0.0
  %1926 = vmatmul.mubr.f32.gmra.mrb[0].mxu0 %v1742
  %v1927 = vpop.f32.mrb[0].mxu0
  %v1928 = vadd.f32 %v1814, %v1927
  %v1929 = vpop.f32.mrb[0].mxu0
  %v1930 = vadd.f32 %v1818, %v1929
  %1931 = vmatprep.mubr.f32.mxu0 0.0
  %1932 = vmatmul.mubr.f32.gmra.mrb[0].mxu0 %v1743
  %v1933 = vpop.f32.mrb[0].mxu0
  %v1934 = vadd.f32 %v1814, %v1933
  %v1935 = vpop.f32.mrb[0].mxu0
  %v1936 = vadd.f32 %v1818, %v1935
  %1937 = vmatprep.mubr.f32.mxu0 0.0
  %1938 = vmatmul.mubr.f32.gmra.mrb[0].mxu0 %v1744
  %v1939 = vpop.f32.mrb[0].mxu0
  %v1940 = vadd.f32 %v1814, %v1939
  %v1941 = vpop.f32.mrb[0].mxu0
  %v1942 = vadd.f32 %v1818, %v1941
  %1943 = vdwg.mxu0
  %1944 = vmatprep.subr.mxu0 %v1748
  %1945 = vmatpush1.msra.mxu0 %v1747
  %1946 = vmatprep.subr.mxu0 %v1752
  %1947 = vmatpush1.msra.mxu0 %v1751
  %1948 = vmatprep.subr.mxu0 %v1756
  %1949 = vmatpush1.msra.mxu0 %v1755
  %1950 = vmatprep.subr.mxu0 %v1760
  %1951 = vmatpush1.msra.mxu0 %v1759
  %1952 = vmatprep.subr.mxu0 %v1764
  %1953 = vmatpush1.msra.mxu0 %v1763
  %1954 = vmatprep.subr.mxu0 %v1768
  %1955 = vmatpush1.msra.mxu0 %v1767
  %1956 = vmatprep.subr.mxu0 %v1772
  %1957 = vmatpush1.msra.mxu0 %v1771
  %1958 = vmatprep.subr.mxu0 %v1776
  %1959 = vmatpush1.msra.mxu0 %v1775
  %1960 = vmatprep.subr.mxu0 %v1780
  %1961 = vmatpush1.msra.mxu0 %v1779
  %1962 = vmatprep.subr.mxu0 %v1784
  %1963 = vmatpush1.msra.mxu0 %v1783
  %1964 = vmatprep.subr.mxu0 %v1788
  %1965 = vmatpush1.msra.mxu0 %v1787
  %1966 = vmatprep.subr.mxu0 %v1792
  %1967 = vmatpush1.msra.mxu0 %v1791
  %1968 = vmatprep.subr.mxu0 %v1796
  %1969 = vmatpush1.msra.mxu0 %v1795
  %1970 = vmatprep.subr.mxu0 %v1800
  %1971 = vmatpush1.msra.mxu0 %v1799
  %1972 = vmatprep.subr.mxu0 %v1804
  %1973 = vmatpush1.msra.mxu0 %v1803
  %1974 = vmatprep.subr.mxu0 %v1808
  %1975 = vmatpush1.msra.mxu0 %v1807
  %1976 = vmatprep.subr.mxu0 0.0
  %1977 = vmatpush1.msra.mxu0 0.0
  %1978 = vmatprep.subr.mxu0 0.0
  %1979 = vmatpush1.msra.mxu0 0.0
  %1980 = vmatprep.subr.mxu0 0.0
  %1981 = vmatpush1.msra.mxu0 0.0
  %1982 = vmatprep.subr.mxu0 0.0
  %1983 = vmatpush1.msra.mxu0 0.0
  %1984 = vmatprep.subr.mxu0 0.0
  %1985 = vmatpush1.msra.mxu0 0.0
  %1986 = vmatprep.subr.mxu0 0.0
  %1987 = vmatpush1.msra.mxu0 0.0
  %1988 = vmatprep.subr.mxu0 0.0
  %1989 = vmatpush1.msra.mxu0 0.0
  %1990 = vmatprep.subr.mxu0 0.0
  %1991 = vmatpush1.msra.mxu0 0.0
  %1992 = vmatprep.subr.mxu0 0.0
  %1993 = vmatpush1.msra.mxu0 0.0
  %1994 = vmatprep.subr.mxu0 0.0
  %1995 = vmatpush1.msra.mxu0 0.0
  %1996 = vmatprep.subr.mxu0 0.0
  %1997 = vmatpush1.msra.mxu0 0.0
  %1998 = vmatprep.subr.mxu0 0.0
  %1999 = vmatpush1.msra.mxu0 0.0
  %2000 = vmatprep.subr.mxu0 0.0
  %2001 = vmatpush1.msra.mxu0 0.0
  %2002 = vmatprep.subr.mxu0 0.0
  %2003 = vmatpush1.msra.mxu0 0.0
  %2004 = vmatprep.subr.mxu0 0.0
  %2005 = vmatpush1.msra.mxu0 0.0
  %2006 = vmatprep.subr.mxu0 0.0
  %2007 = vmatpush1.msra.mxu0 0.0
  %2008 = vmatprep.mubr.f32.mxu0 0.0
  %2009 = vmatmul.mubr.f32.gmra.mrb[0].mxu0 %v1737
  %v2010 = vpop.f32.mrb[0].mxu0
  %v2011 = vadd.f32 %v1822, %v2010
  %v2012 = vpop.f32.mrb[0].mxu0
  %v2013 = vadd.f32 %v1826, %v2012
  %2014 = vmatprep.mubr.f32.mxu0 0.0
  %2015 = vmatmul.mubr.f32.gmra.mrb[0].mxu0 %v1738
  %v2016 = vpop.f32.mrb[0].mxu0
  %v2017 = vadd.f32 %v1822, %v2016
  %v2018 = vpop.f32.mrb[0].mxu0
  %v2019 = vadd.f32 %v1826, %v2018
  %2020 = vmatprep.mubr.f32.mxu0 0.0
  %2021 = vmatmul.mubr.f32.gmra.mrb[0].mxu0 %v1739
  %v2022 = vpop.f32.mrb[0].mxu0
  %v2023 = vadd.f32 %v1822, %v2022
  %v2024 = vpop.f32.mrb[0].mxu0
  %v2025 = vadd.f32 %v1826, %v2024
  %2026 = vmatprep.mubr.f32.mxu0 0.0
  %2027 = vmatmul.mubr.f32.gmra.mrb[0].mxu0 %v1740
  %v2028 = vpop.f32.mrb[0].mxu0
  %v2029 = vadd.f32 %v1822, %v2028
  %v2030 = vpop.f32.mrb[0].mxu0
  %v2031 = vadd.f32 %v1826, %v2030
  %2032 = vmatprep.mubr.f32.mxu0 0.0
  %2033 = vmatmul.mubr.f32.gmra.mrb[0].mxu0 %v1741
  %v2034 = vpop.f32.mrb[0].mxu0
  %v2035 = vadd.f32 %v1822, %v2034
  %v2036 = vpop.f32.mrb[0].mxu0
  %v2037 = vadd.f32 %v1826, %v2036
  %2038 = vmatprep.mubr.f32.mxu0 0.0
  %2039 = vmatmul.mubr.f32.gmra.mrb[0].mxu0 %v1742
  %v2040 = vpop.f32.mrb[0].mxu0
  %v2041 = vadd.f32 %v1822, %v2040
  %v2042 = vpop.f32.mrb[0].mxu0
  %v2043 = vadd.f32 %v1826, %v2042
  %2044 = vmatprep.mubr.f32.mxu0 0.0
  %2045 = vmatmul.mubr.f32.gmra.mrb[0].mxu0 %v1743
  %v2046 = vpop.f32.mrb[0].mxu0
  %v2047 = vadd.f32 %v1822, %v2046
  %v2048 = vpop.f32.mrb[0].mxu0
  %v2049 = vadd.f32 %v1826, %v2048
  %2050 = vmatprep.mubr.f32.mxu0 0.0
  %2051 = vmatmul.mubr.f32.gmra.mrb[0].mxu0 %v1744
  %v2052 = vpop.f32.mrb[0].mxu0
  %v2053 = vadd.f32 %v1822, %v2052
  %v2054 = vpop.f32.mrb[0].mxu0
  %v2055 = vadd.f32 %v1826, %v2054
  %2056 = vdwg.mxu0
  %v2057 = vtanh.pop %v1898
  %v2058 = vtanh.pop %v1900
  %v2059 = vtanh.pop %v2011
  %v2060 = vtanh.pop %v2013
  %v2061 = vtanh.pop %v1904
  %v2062 = vtanh.pop %v1906
  %v2063 = vtanh.pop %v2017
  %v2064 = vtanh.pop %v2019
  %v2065 = vtanh.pop %v1910
  %v2066 = vtanh.pop %v1912
  %v2067 = vtanh.pop %v2023
  %v2068 = vtanh.pop %v2025
  %v2069 = vtanh.pop %v1916
  %v2070 = vtanh.pop %v1918
  %v2071 = vtanh.pop %v2029
  %v2072 = vtanh.pop %v2031
  %v2073 = vtanh.pop %v1922
  %v2074 = vtanh.pop %v1924
  %v2075 = vtanh.pop %v2035
  %v2076 = vtanh.pop %v2037
  %v2077 = vtanh.pop %v1928
  %v2078 = vtanh.pop %v1930
  %v2079 = vtanh.pop %v2041
  %v2080 = vtanh.pop %v2043
  %v2081 = vtanh.pop %v1934
  %v2082 = vtanh.pop %v1936
  %v2083 = vtanh.pop %v2047
  %v2084 = vtanh.pop %v2049
  %v2085 = vtanh.pop %v1940
  %v2086 = vtanh.pop %v1942
  %v2087 = vtanh.pop %v2053
  %v2088 = vtanh.pop %v2055
  %v2089 = vld [vmem:[%s7] sm:$0xf]
  %v2091 = vlaneseq
  %v2092 = vshrl.u32 %v2091, 7
  %v2093 = vsub.s32 0, %v2092
  %v2094 = vrot.slane %v2089, %v2093
  %v2095 = vlaneseq
  %v2096 = vshrl.u32 %v2095, 7
  %v2097 = vsub.s32 1, %v2096
  %v2098 = vrot.slane %v2089, %v2097
  %v2099 = vlaneseq
  %v2100 = vshrl.u32 %v2099, 7
  %v2101 = vsub.s32 2, %v2100
  %v2102 = vrot.slane %v2089, %v2101
  %v2103 = vlaneseq
  %v2104 = vshrl.u32 %v2103, 7
  %v2105 = vsub.s32 3, %v2104
  %v2106 = vrot.slane %v2089, %v2105
  %v2111 = vmul.f32 %v2057, %v2094
  %v2112 = vmul.f32 %v2058, %v2098
  %v2113 = vmul.f32 %v2059, %v2102
  %v2114 = vmul.f32 %v2060, %v2106
  %v2115 = vmul.f32 %v2061, %v2094
  %v2116 = vmul.f32 %v2062, %v2098
  %v2117 = vmul.f32 %v2063, %v2102
  %v2118 = vmul.f32 %v2064, %v2106
  %v2119 = vmul.f32 %v2065, %v2094
  %v2120 = vmul.f32 %v2066, %v2098
  %v2121 = vmul.f32 %v2067, %v2102
  %v2122 = vmul.f32 %v2068, %v2106
  %v2123 = vmul.f32 %v2069, %v2094
  %v2124 = vmul.f32 %v2070, %v2098
  %v2125 = vmul.f32 %v2071, %v2102
  %v2126 = vmul.f32 %v2072, %v2106
  %v2127 = vmul.f32 %v2073, %v2094
  %v2128 = vmul.f32 %v2074, %v2098
  %v2129 = vmul.f32 %v2075, %v2102
  %v2130 = vmul.f32 %v2076, %v2106
  %v2131 = vmul.f32 %v2077, %v2094
  %v2132 = vmul.f32 %v2078, %v2098
  %v2133 = vmul.f32 %v2079, %v2102
  %v2134 = vmul.f32 %v2080, %v2106
  %v2135 = vmul.f32 %v2081, %v2094
  %v2136 = vmul.f32 %v2082, %v2098
  %v2137 = vmul.f32 %v2083, %v2102
  %v2138 = vmul.f32 %v2084, %v2106
  %v2139 = vmul.f32 %v2085, %v2094
  %v2140 = vmul.f32 %v2086, %v2098
  %v2141 = vmul.f32 %v2087, %v2102
  %v2142 = vmul.f32 %v2088, %v2106
  %v2143 = vadd.f32 %v2111, %v2112
  %v2144 = vadd.f32 %v2143, %v2113
  %v2145 = vadd.f32 %v2144, %v2114
  %2146 = vadd.xlane.f32.xlu0 %v2145
  %v2147 = vpop.xlane.xlu0 %2146
  %v2148 = vadd.f32 %v2115, %v2116
  %v2149 = vadd.f32 %v2148, %v2117
  %v2150 = vadd.f32 %v2149, %v2118
  %2151 = vadd.xlane.f32.xlu0 %v2150
  %v2152 = vpop.xlane.xlu0 %2151
  %v2153 = vadd.f32 %v2119, %v2120
  %v2154 = vadd.f32 %v2153, %v2121
  %v2155 = vadd.f32 %v2154, %v2122
  %2156 = vadd.xlane.f32.xlu0 %v2155
  %v2157 = vpop.xlane.xlu0 %2156
  %v2158 = vadd.f32 %v2123, %v2124
  %v2159 = vadd.f32 %v2158, %v2125
  %v2160 = vadd.f32 %v2159, %v2126
  %2161 = vadd.xlane.f32.xlu0 %v2160
  %v2162 = vpop.xlane.xlu0 %2161
  %v2163 = vadd.f32 %v2127, %v2128
  %v2164 = vadd.f32 %v2163, %v2129
  %v2165 = vadd.f32 %v2164, %v2130
  %2166 = vadd.xlane.f32.xlu0 %v2165
  %v2167 = vpop.xlane.xlu0 %2166
  %v2168 = vadd.f32 %v2131, %v2132
  %v2169 = vadd.f32 %v2168, %v2133
  %v2170 = vadd.f32 %v2169, %v2134
  %2171 = vadd.xlane.f32.xlu0 %v2170
  %v2172 = vpop.xlane.xlu0 %2171
  %v2173 = vadd.f32 %v2135, %v2136
  %v2174 = vadd.f32 %v2173, %v2137
  %v2175 = vadd.f32 %v2174, %v2138
  %2176 = vadd.xlane.f32.xlu0 %v2175
  %v2177 = vpop.xlane.xlu0 %2176
  %v2178 = vadd.f32 %v2139, %v2140
  %v2179 = vadd.f32 %v2178, %v2141
  %v2180 = vadd.f32 %v2179, %v2142
  %2181 = vadd.xlane.f32.xlu0 %v2180
  %v2182 = vpop.xlane.xlu0 %2181
  %v2183 = vmax.f32 %v2147, %v2167
  %v2184 = vmax.f32 %v2152, %v2172
  %v2185 = vmax.f32 %v2157, %v2177
  %v2186 = vmax.f32 %v2162, %v2182
  %v2187 = vmax.f32 %v2183, %v2184
  %v2188 = vmax.f32 %v2185, %v2186
  %v2189 = vmax.f32 %v2187, %v2188
  %v2190 = vld [vmem:[#allocation4] sm:$0x1]
  %v2192 = vlaneseq
  %v2193 = vshrl.u32 %v2192, 7
  %v2194 = vsub.s32 0, %v2193
  %v2195 = vrot.slane %v2190, %v2194
  %v2197 = vadd.f32 %v2189, %v2195
  %v2198 = vxor.u32 %v2197, 2147483648
  %v2199 = vmul.f32 %v2198, 1.442695
  %v2200 = vpow.pop %v2199
  %v2201 = vadd.f32 %v2200, 1.0
  %v2202 = vrcp.pop %v2201
  %v2203 = vmul.f32 1.0, %v2202
  %2205 = vset.pattern.permute.xlu0 0
  %2206 = vperm.xlu0 %2205, %v2203
  %v2207 = vpop.permute.xlu0 %2206
  %2209 = vst [vmem:[%s9] sm:$0xff] %v2207
  // Predicated region
  $region38: #{adopt_forward.1} parent=0 // pred_check
    _
  $region39: #{adopt_forward.1} parent=0 // pred_check_branch
    %2211 = sbr.rel (0) target = $region41
  $region40: #{adopt_forward.1} parent=0 // pred_region
    _
  $region41: #{adopt_forward.1} parent=0 // pred_fallthru
    _
  // Predicated region
  $region42: #{adopt_forward.1} parent=0 // pred_check
    _
  $region43: #{adopt_forward.1} parent=0 // pred_check_branch
    %2213 = sbr.rel (0) target = $region45
  $region44: #{adopt_forward.1} parent=0 // pred_region
    _
  $region45: #{adopt_forward.1} parent=0 // pred_fallthru
    _

</llo_original>
